<compile_context>
chip_gen: v6e
topology: v6e:2x2x1
jax: 0.10.0
libtpu: 0.0.40
codegen_flags: <defaults>
</compile_context>

<pallas_src>
import functools
import math

import jax
import jax.numpy as jnp
from jax.experimental import pallas as pl
from jax.experimental.pallas import tpu as pltpu

NEG_INF = -1e30
LN_EPS = 1e-5
BF16 = jnp.bfloat16


def _tile(n, cap):
    """Largest power-of-two-ish divisor of n that is <= cap."""
    for t in (512, 256, 128, 64, 32, 16, 8):
        if t <= cap and n % t == 0:
            return t
    return n


# ---------------------------------------------------------------------------
# Kernel 1: attention LayerNorm + QKV projection + RoPE + q-scale, fused.
# Q/K columns are in the per-head de-interleaved layout [x0..., x1...] so the
# pair partner of column j is column j +/- half within the same head; the swap
# is expressed with static lane slices (no roll-direction ambiguity).
# ---------------------------------------------------------------------------
def ln_qkv_rope_kernel(x_ref, g_ref, b_ref, w_ref, cos_ref, sin_ref,
                       q_ref, k_ref, v_ref, *, nh, hd, scale):
    d = nh * hd
    half = hd // 2
    x = x_ref[...]                                                # (TT, D) f32
    mu = jnp.mean(x, axis=-1, keepdims=True)
    var = jnp.mean(jnp.square(x - mu), axis=-1, keepdims=True)
    xn = (x - mu) * jax.lax.rsqrt(var + LN_EPS) * g_ref[...] + b_ref[...]
    qkv = jnp.dot(xn.astype(BF16), w_ref[...],
                  preferred_element_type=jnp.float32)             # (TT, 3D) f32

    cos = cos_ref[...]                                            # (TT, half)
    sin = sin_ref[...]

    def rope(z):                      # z: (TT, D), per-head [x0 | x1] layout
        parts = []
        for h in range(nh):
            a = z[:, h * hd:h * hd + half]                        # x0
            b = z[:, h * hd + half:(h + 1) * hd]                  # x1
            parts.append(a * cos - b * sin)
            parts.append(b * cos + a * sin)
        return jnp.concatenate(parts, axis=-1)                    # (TT, D)

    q_ref[...] = (rope(qkv[:, :d]) * scale).astype(BF16)
    k_ref[...] = rope(qkv[:, d:2 * d]).astype(BF16)
    v_ref[...] = qkv[:, 2 * d:].astype(BF16)


# ---------------------------------------------------------------------------
# Kernel 2: full (non-causal) softmax attention.  One (batch, query-tile) per
# grid step; all heads processed in-kernel from lane-dense (rows, D) blocks.
# Output is written directly in the flat (N, D) bf16 layout out_proj consumes.
# ---------------------------------------------------------------------------
def attention_kernel(q_ref, k_ref, v_ref, o_ref, *, nh, hd):
    outs = []
    for h in range(nh):
        lo, hi = h * hd, (h + 1) * hd
        q = q_ref[:, lo:hi]                                       # (TQ, hd) bf16
        k = k_ref[:, lo:hi]                                       # (T,  hd) bf16
        v = v_ref[:, lo:hi]
        s = jax.lax.dot_general(q, k, (((1,), (1,)), ((), ())),
                                preferred_element_type=jnp.float32)  # (TQ, T)
        m = jnp.max(s, axis=-1, keepdims=True)
        e = jnp.exp(s - m)
        p = e * pl.reciprocal(jnp.sum(e, axis=-1, keepdims=True), approx=True)
        outs.append(jnp.dot(p.astype(BF16), v,
                            preferred_element_type=jnp.float32))  # (TQ, hd)
    o_ref[...] = jnp.concatenate(outs, axis=-1).astype(BF16)


# ---------------------------------------------------------------------------
# Kernel 3: attention output projection fused with the residual add.
# ---------------------------------------------------------------------------
def out_proj_kernel(a_ref, w_ref, res_ref, o_ref):
    o_ref[...] = res_ref[...] + jnp.dot(a_ref[...], w_ref[...],
                                        preferred_element_type=jnp.float32)


# ---------------------------------------------------------------------------
# Kernel 4: FFN LayerNorm + MoE gating.  Emits normalized activations (bf16,
# consumed by the expert kernel), the dense (TM, E) combine weights and the
# full-softmax probs (for the load-balancing loss).  No cross-tile
# accumulators -> the grid axis is "parallel" (megacore-friendly on v7x); the
# tiny (E,)-sized reductions happen in XLA.
# ---------------------------------------------------------------------------
def gate_kernel(x_ref, g_ref, b_ref, wg_ref, bias_ref,
                xn_ref, cw_ref, pr_ref, *, top_k):
    x = x_ref[...]                                                # (TM, D) f32
    mu = jnp.mean(x, axis=-1, keepdims=True)
    var = jnp.mean(jnp.square(x - mu), axis=-1, keepdims=True)
    xn = (x - mu) * jax.lax.rsqrt(var + LN_EPS) * g_ref[...] + b_ref[...]
    xn_bf = xn.astype(BF16)
    xn_ref[...] = xn_bf

    scores = jnp.dot(xn_bf, wg_ref[...],
                     preferred_element_type=jnp.float32) + bias_ref[...]

    # full softmax over experts (load-balancing loss path, exact divide)
    m = jnp.max(scores, axis=-1, keepdims=True)
    ef = jnp.exp(scores - m)
    pr_ref[...] = ef / jnp.sum(ef, axis=-1, keepdims=True)

    # top-k selection via iterative argmax (first-occurrence tie-break)
    n_exp = scores.shape[-1]
    lane = jax.lax.broadcasted_iota(jnp.int32, scores.shape, 1)
    s = scores
    sel = jnp.zeros(scores.shape, dtype=jnp.bool_)
    for _ in range(top_k):
        mmax = jnp.max(s, axis=-1, keepdims=True)
        first_idx = jnp.min(jnp.where(s == mmax, lane, n_exp),
                            axis=-1, keepdims=True)
        first = lane == first_idx
        sel = jnp.logical_or(sel, first)
        s = jnp.where(first, NEG_INF, s)

    # softmax over the selected scores, scattered to a dense (TM, E) matrix
    msel = jnp.max(jnp.where(sel, scores, NEG_INF), axis=-1, keepdims=True)
    ex = jnp.where(sel, jnp.exp(scores - msel), 0.0)
    cw_ref[...] = ex * pl.reciprocal(jnp.sum(ex, axis=-1, keepdims=True),
                                     approx=True)


# ---------------------------------------------------------------------------
# Kernel 5: experts.  grid = (token_tiles, experts); the output tile stays
# resident in VMEM across the expert axis and is seeded with the residual.
# ---------------------------------------------------------------------------
def expert_kernel(counts_ref, xn_ref, res_ref, w1a_ref, w1b_ref, w2_ref,
                  cw_ref, o_ref):
    e = pl.program_id(1)

    @pl.when(e == 0)
    def _():
        o_ref[...] = res_ref[...]          # fused residual: out = x + sum_e(...)

    @pl.when(counts_ref[e] > 0)            # skip experts with no routed tokens
    def _():
        x = xn_ref[...]                                           # (TM, D) bf16
        h1 = jnp.dot(x, w1a_ref[0], preferred_element_type=jnp.float32)
        h2 = jnp.dot(x, w1b_ref[0], preferred_element_type=jnp.float32)
        act = h1 * jax.nn.sigmoid(h1) * h2                        # SiLU(h1)*h2
        y = jnp.dot(act.astype(BF16), w2_ref[0],
                    preferred_element_type=jnp.float32)           # (TM, D)
        lane = jax.lax.broadcasted_iota(jnp.int32, cw_ref.shape, 1)
        gw = jnp.sum(jnp.where(lane == e, cw_ref[...], 0.0),
                     axis=-1, keepdims=True)                      # (TM, 1)
        o_ref[...] += gw * y


# ---------------------------------------------------------------------------
# Reference-only RoPE (torchtune RotaryPositionalEmbeddings, interleaved pairs)
# ---------------------------------------------------------------------------
def apply_rope(x, base=10000.0):
    B, T, nh, hd = x.shape
    half = hd // 2
    theta = 1.0 / (base ** (jnp.arange(half, dtype=jnp.float32) * 2.0 / hd))
    ang = jnp.arange(T, dtype=jnp.float32)[:, None] * theta[None, :]
    cos = jnp.cos(ang)[None, :, None, :]
    sin = jnp.sin(ang)[None, :, None, :]
    xs = x.reshape(B, T, nh, half, 2)
    x0, x1 = xs[..., 0], xs[..., 1]
    out = jnp.stack([x0 * cos - x1 * sin, x1 * cos + x0 * sin], axis=-1)
    return out.reshape(B, T, nh, hd)


# ---------------------------------------------------------------------------
# Wrappers
# ---------------------------------------------------------------------------
def attn_block_forward(x, p):
    """x + MHA(LayerNorm(x)) via Pallas kernels."""
    B, T, D = x.shape
    nh = p["num_heads"]
    hd = D // nh
    half = hd // 2
    N = B * T
    xf = x.reshape(N, D)

    TT = _tile(T, 256)                 # LN+QKV token tile (divides T)
    tps = T // TT

    # RoPE tables (T, half) -- tiny, built by XLA once per call
    freq = 1.0 / (10000.0 ** (jnp.arange(half, dtype=jnp.float32) * 2.0 / hd))
    ang = jnp.arange(T, dtype=jnp.float32)[:, None] * freq[None, :]
    cos_t = jnp.cos(ang)
    sin_t = jnp.sin(ang)

    q, k, v = pl.pallas_call(
        functools.partial(ln_qkv_rope_kernel, nh=nh, hd=hd,
                          scale=1.0 / math.sqrt(hd)),
        grid=(N // TT,),
        in_specs=[
            pl.BlockSpec((TT, D), lambda i: (i, 0)),
            pl.BlockSpec((1, D), lambda i: (0, 0)),
            pl.BlockSpec((1, D), lambda i: (0, 0)),
            pl.BlockSpec((D, 3 * D), lambda i: (0, 0)),
            pl.BlockSpec((TT, half), lambda i: (i % tps, 0)),
            pl.BlockSpec((TT, half), lambda i: (i % tps, 0)),
        ],
        out_specs=[pl.BlockSpec((TT, D), lambda i: (i, 0))] * 3,
        out_shape=[jax.ShapeDtypeStruct((N, D), BF16)] * 3,
        compiler_params=pltpu.CompilerParams(
            dimension_semantics=("parallel",),
            vmem_limit_bytes=48 * 1024 * 1024),
    )(xf, p["ln1_g"].reshape(1, D), p["ln1_b"].reshape(1, D),
      p["wqkv_kern"], cos_t, sin_t)

    TQ = _tile(T, 256)                 # query tile (divides T)
    qpb = T // TQ                      # query tiles per batch row

    attn = pl.pallas_call(
        functools.partial(attention_kernel, nh=nh, hd=hd),
        grid=(B, qpb),
        in_specs=[
            pl.BlockSpec((TQ, D), lambda b, i: (b * qpb + i, 0)),
            pl.BlockSpec((T, D), lambda b, i: (b, 0)),
            pl.BlockSpec((T, D), lambda b, i: (b, 0)),
        ],
        out_specs=pl.BlockSpec((TQ, D), lambda b, i: (b * qpb + i, 0)),
        out_shape=jax.ShapeDtypeStruct((N, D), BF16),
        compiler_params=pltpu.CompilerParams(
            dimension_semantics=("parallel", "parallel")),
    )(q, k, v)

    TM = _tile(N, 512)
    x2 = pl.pallas_call(
        out_proj_kernel,
        grid=(N // TM,),
        in_specs=[
            pl.BlockSpec((TM, D), lambda i: (i, 0)),
            pl.BlockSpec((D, D), lambda i: (0, 0)),
            pl.BlockSpec((TM, D), lambda i: (i, 0)),
        ],
        out_specs=pl.BlockSpec((TM, D), lambda i: (i, 0)),
        out_shape=jax.ShapeDtypeStruct((N, D), jnp.float32),
        compiler_params=pltpu.CompilerParams(
            dimension_semantics=("parallel",)),
    )(attn, p["wout_t"], xf)

    return x2.reshape(B, T, D)


def moe_block_forward(x, p, top_k):
    """x + MoE(LayerNorm(x)), plus the load-balancing loss (eval mode)."""
    B, T, D = x.shape
    N = B * T
    E = p["wg_t"].shape[1]
    H = p["w2_t"].shape[1]
    xf = x.reshape(N, D)

    TMg = _tile(N, 512)
    xnorm, cw, probs = pl.pallas_call(
        functools.partial(gate_kernel, top_k=top_k),
        grid=(N // TMg,),
        in_specs=[
            pl.BlockSpec((TMg, D), lambda i: (i, 0)),
            pl.BlockSpec((1, D), lambda i: (0, 0)),
            pl.BlockSpec((1, D), lambda i: (0, 0)),
            pl.BlockSpec((D, E), lambda i: (0, 0)),
            pl.BlockSpec((1, E), lambda i: (0, 0)),
        ],
        out_specs=[
            pl.BlockSpec((TMg, D), lambda i: (i, 0)),
            pl.BlockSpec((TMg, E), lambda i: (i, 0)),
            pl.BlockSpec((TMg, E), lambda i: (i, 0)),
        ],
        out_shape=[
            jax.ShapeDtypeStruct((N, D), BF16),
            jax.ShapeDtypeStruct((N, E), jnp.float32),
            jax.ShapeDtypeStruct((N, E), jnp.float32),
        ],
        compiler_params=pltpu.CompilerParams(
            dimension_semantics=("parallel",)),
    )(xf, p["ln2_g"].reshape(1, D), p["ln2_b"].reshape(1, D), p["wg_t"],
      p["expert_biases"].reshape(1, E))

    # tiny (E,)-sized reductions done by XLA (keeps the gate kernel "parallel")
    counts = jnp.sum(cw > 0.0, axis=0, dtype=jnp.int32)           # (E,)

    TMe = _tile(N, 256)
    out_flat = pl.pallas_call(
        expert_kernel,
        grid_spec=pltpu.PrefetchScalarGridSpec(
            num_scalar_prefetch=1,
            grid=(N // TMe, E),
            in_specs=[
                pl.BlockSpec((TMe, D), lambda i, e, c: (i, 0)),       # x_norm
                pl.BlockSpec((TMe, D), lambda i, e, c: (i, 0)),       # residual
                pl.BlockSpec((1, D, H), lambda i, e, c: (e, 0, 0)),   # W1 gate
                pl.BlockSpec((1, D, H), lambda i, e, c: (e, 0, 0)),   # W1 up
                pl.BlockSpec((1, H, D), lambda i, e, c: (e, 0, 0)),   # W2
                pl.BlockSpec((TMe, E), lambda i, e, c: (i, 0)),       # combine w
            ],
            out_specs=pl.BlockSpec((TMe, D), lambda i, e, c: (i, 0)),
        ),
        out_shape=jax.ShapeDtypeStruct((N, D), jnp.float32),
        compiler_params=pltpu.CompilerParams(
            dimension_semantics=("parallel", "arbitrary"),
            vmem_limit_bytes=48 * 1024 * 1024),
    )(counts, xnorm, xf, p["w1a_t"], p["w1b_t"], p["w2_t"], cw)

    usage = counts.astype(jnp.float32)
    usage_ratio = usage / jnp.sum(usage)
    mean_probs = jnp.mean(probs, axis=0)
    prob_ratio = mean_probs / jnp.sum(mean_probs)
    lb_loss = jnp.sum(usage_ratio * prob_ratio) * E
    return out_flat.reshape(B, T, D), lb_loss


def transformer_block_forward(x, p, top_k):
    x2 = attn_block_forward(x, p)
    return moe_block_forward(x2, p, top_k)


# ---------------------------------------------------------------------------
# Pure-JAX references mirroring the kernels' precision policy
# (bf16 matmul operands, f32 accumulation / elementwise math, original
# interleaved RoPE layout -- validates the column-permutation trick).
# ---------------------------------------------------------------------------
def _ln_ref(v, g, b):
    mu = jnp.mean(v, axis=-1, keepdims=True)
    var = jnp.mean(jnp.square(v - mu), axis=-1, keepdims=True)
    return (v - mu) * jax.lax.rsqrt(var + LN_EPS) * g + b


def attn_block_reference(x, p):
    B, T, D = x.shape
    nh = p["num_heads"]
    hd = D // nh
    N = B * T
    xf = x.reshape(N, D)
    xn = _ln_ref(xf, p["ln1_g"], p["ln1_b"])
    qkv = jnp.dot(xn.astype(BF16), p["wqkv_t"],
                  preferred_element_type=jnp.float32).reshape(B, T, 3, nh, hd)
    scale = 1.0 / math.sqrt(hd)
    q = (apply_rope(qkv[:, :, 0]) * scale).astype(BF16).transpose(0, 2, 1, 3)
    k = apply_rope(qkv[:, :, 1]).astype(BF16).transpose(0, 2, 1, 3)
    v = qkv[:, :, 2].astype(BF16).transpose(0, 2, 1, 3)
    s = jnp.einsum("bhqd,bhkd->bhqk", q, k, preferred_element_type=jnp.float32)
    m = jnp.max(s, axis=-1, keepdims=True)
    e = jnp.exp(s - m)
    pattn = e / jnp.sum(e, axis=-1, keepdims=True)
    attn = jnp.einsum("bhqk,bhkd->bhqd", pattn.astype(BF16), v,
                      preferred_element_type=jnp.float32)
    attn_flat = attn.transpose(0, 2, 1, 3).reshape(N, D).astype(BF16)
    x2 = xf + jnp.dot(attn_flat, p["wout_t"], preferred_element_type=jnp.float32)
    return x2.reshape(B, T, D)


def moe_block_reference(x, p, top_k):
    B, T, D = x.shape
    N = B * T
    E = p["wg_t"].shape[1]
    xf = x.reshape(N, D)
    xn = _ln_ref(xf, p["ln2_g"], p["ln2_b"])
    xn_bf = xn.astype(BF16)
    scores = jnp.dot(xn_bf, p["wg_t"],
                     preferred_element_type=jnp.float32) + p["expert_biases"]
    vals, idx = jax.lax.top_k(scores, top_k)
    gates = jax.nn.softmax(vals, axis=-1)
    out = xf
    for e in range(E):
        gw = jnp.sum(jnp.where(idx == e, gates, 0.0), axis=-1, keepdims=True)
        h1 = jnp.dot(xn_bf, p["w1a_t"][e], preferred_element_type=jnp.float32)
        h2 = jnp.dot(xn_bf, p["w1b_t"][e], preferred_element_type=jnp.float32)
        y = jnp.dot((h1 * jax.nn.sigmoid(h1) * h2).astype(BF16), p["w2_t"][e],
                    preferred_element_type=jnp.float32)
        out = out + gw * y
    probs = jax.nn.softmax(scores, axis=-1)
    usage = jnp.sum(jax.nn.one_hot(idx, E, dtype=jnp.float32), axis=(0, 1))
    usage_ratio = usage / jnp.sum(usage)
    mean_probs = jnp.mean(probs, axis=0)
    prob_ratio = mean_probs / jnp.sum(mean_probs)
    loss = jnp.sum(usage_ratio * prob_ratio) * E
    return out.reshape(B, T, D), loss


if __name__ == "__main__":
    B, T, D = 2, 16, 128          # batch, seq, embed
    NH = 4                        # attention heads (head_dim = 32)
    H = 128                       # expert FFN hidden dim (W1 is 2H x D)
    E = 8                         # num experts
    TOPK = 2
    WSCALE = 0.1
    HD = D // NH
    HALF = HD // 2

    key = jax.random.PRNGKey(0)
    ks = jax.random.split(key, 10)
    x = jax.random.normal(ks[0], (B, T, D), jnp.float32)
    wqkv = jax.random.normal(ks[1], (3 * D, D), jnp.float32) * WSCALE
    wout = jax.random.normal(ks[2], (D, D), jnp.float32) * WSCALE
    wg = jax.random.normal(ks[3], (E, D), jnp.float32) * WSCALE
    w1 = jax.random.normal(ks[4], (E, 2 * H, D), jnp.float32) * WSCALE
    w2 = jax.random.normal(ks[5], (E, D, H), jnp.float32) * WSCALE

    wqkv_t = wqkv.T.astype(BF16)                                   # (D, 3D)
    # de-interleave the RoPE pairs within each head of the Q and K projections
    # (kernel-side layout; attention scores are invariant to this permutation)
    didx = jnp.arange(HD).reshape(HALF, 2).T.reshape(-1)           # [0,2,..,1,3,..]
    col_perm = (jnp.arange(NH)[:, None] * HD + didx[None, :]).reshape(-1)
    wqkv_kern = jnp.concatenate(
        [wqkv_t[:, :D][:, col_perm], wqkv_t[:, D:2 * D][:, col_perm],
         wqkv_t[:, 2 * D:]], axis=1)

    params = {
        "num_heads": NH,
        "ln1_g": 1.0 + 0.1 * jax.random.normal(ks[6], (D,), jnp.float32),
        "ln1_b": 0.1 * jax.random.normal(ks[7], (D,), jnp.float32),
        "ln2_g": 1.0 + 0.1 * jax.random.normal(ks[8], (D,), jnp.float32),
        "ln2_b": 0.1 * jax.random.normal(ks[9], (D,), jnp.float32),
        # weights pre-transposed / pre-split / pre-permuted once, stored bf16
        "wqkv_t": wqkv_t,                                              # reference
        "wqkv_kern": wqkv_kern,                                        # kernel
        "wout_t": wout.T.astype(BF16),                                 # (D, D)
        "wg_t": wg.T.astype(BF16),                                     # (D, E)
        "expert_biases": jnp.zeros((E,), jnp.float32),                 # eval: 0
        "w1a_t": jnp.transpose(w1[:, :H, :], (0, 2, 1)).astype(BF16),  # (E, D, H)
        "w1b_t": jnp.transpose(w1[:, H:, :], (0, 2, 1)).astype(BF16),  # (E, D, H)
        "w2_t": jnp.transpose(w2, (0, 2, 1)).astype(BF16),             # (E, H, D)
    }

    out, lb_loss = transformer_block_forward(x, params, TOPK)
    jax.block_until_ready((out, lb_loss))
    assert out.shape == (B, T, D)

    # Staged verification against the mirrored-precision JAX reference:
    #  1) attention sub-block end-to-end, 2) MoE sub-block fed the kernel's x2
    #     so the top-k routing decision is compared on identical inputs.
    x2_k = attn_block_forward(x, params)
    x2_r = attn_block_reference(x, params)
    assert jnp.allclose(x2_k, x2_r, atol=1e-2, rtol=1e-2), "attention mismatch"

    out_r, loss_r = moe_block_reference(x2_k, params, TOPK)
    assert jnp.allclose(out, out_r, atol=1e-2, rtol=1e-2), "moe output mismatch"
    assert jnp.allclose(lb_loss, loss_r, atol=1e-4, rtol=1e-3), "lb loss mismatch"

    print("KERNEL_OK")
</pallas_src>

<mosaic_0001>
module attributes {stable_mosaic.version = 11 : i64} {
  func.func @ln_qkv_rope_kernel(%arg0: i32, %arg1: memref<16x128xf32, #tpu.memory_space<vmem>>, %arg2: memref<1x128xf32, #tpu.memory_space<vmem>>, %arg3: memref<1x128xf32, #tpu.memory_space<vmem>>, %arg4: memref<128x384xbf16, #tpu.memory_space<vmem>>, %arg5: memref<16x16xf32, #tpu.memory_space<vmem>>, %arg6: memref<16x16xf32, #tpu.memory_space<vmem>>, %arg7: memref<16x128xbf16, #tpu.memory_space<vmem>>, %arg8: memref<16x128xbf16, #tpu.memory_space<vmem>>, %arg9: memref<16x128xbf16, #tpu.memory_space<vmem>>) attributes {dimension_semantics = [#tpu.dimension_semantics<parallel>], iteration_bounds = array<i64: 2>, scalar_prefetch = 0 : i64, scratch_operands = 0 : i64, tpu.core_type = #tpu.core_type<tc>, window_params = [{transform_indices = @transform_0, window_bounds = array<i64: 16, 128>}, {pipeline_mode = #tpu.pipeline_mode<synchronous>, transform_indices = @transform_1, window_bounds = array<i64: 1, 128>}, {pipeline_mode = #tpu.pipeline_mode<synchronous>, transform_indices = @transform_2, window_bounds = array<i64: 1, 128>}, {pipeline_mode = #tpu.pipeline_mode<synchronous>, transform_indices = @transform_3, window_bounds = array<i64: 128, 384>}, {transform_indices = @transform_4, window_bounds = array<i64: 16, 16>}, {transform_indices = @transform_5, window_bounds = array<i64: 16, 16>}, {transform_indices = @transform_6, window_bounds = array<i64: 16, 128>}, {transform_indices = @transform_7, window_bounds = array<i64: 16, 128>}, {transform_indices = @transform_8, window_bounds = array<i64: 16, 128>}]} {
    %c0 = arith.constant 0 : index
    %c0_0 = arith.constant 0 : index
    %0 = vector.load %arg1[%c0, %c0_0] : memref<16x128xf32, #tpu.memory_space<vmem>>, vector<16x128xf32>
    %cst = arith.constant dense<0.000000e+00> : vector<16xf32>
    %1 = vector.multi_reduction <add>, %0, %cst [1] : vector<16x128xf32> to vector<16xf32>
    %2 = vector.shape_cast %1 : vector<16xf32> to vector<16x1xf32>
    %cst_1 = arith.constant 1.280000e+02 : f32
    %3 = vector.broadcast %cst_1 : f32 to vector<16x1xf32>
    %4 = arith.divf %2, %3 : vector<16x1xf32>
    %5 = vector.broadcast %4 : vector<16x1xf32> to vector<16x128xf32>
    %6 = arith.subf %0, %5 : vector<16x128xf32>
    %7 = arith.mulf %6, %6 : vector<16x128xf32>
    %cst_2 = arith.constant dense<0.000000e+00> : vector<16xf32>
    %8 = vector.multi_reduction <add>, %7, %cst_2 [1] : vector<16x128xf32> to vector<16xf32>
    %9 = vector.shape_cast %8 : vector<16xf32> to vector<16x1xf32>
    %cst_3 = arith.constant 1.280000e+02 : f32
    %10 = vector.broadcast %cst_3 : f32 to vector<16x1xf32>
    %11 = arith.divf %9, %10 : vector<16x1xf32>
    %12 = vector.broadcast %4 : vector<16x1xf32> to vector<16x128xf32>
    %13 = arith.subf %0, %12 : vector<16x128xf32>
    %cst_4 = arith.constant 9.99999974E-6 : f32
    %14 = vector.broadcast %cst_4 : f32 to vector<16x1xf32>
    %15 = arith.addf %11, %14 : vector<16x1xf32>
    %16 = math.rsqrt %15 : vector<16x1xf32>
    %17 = vector.broadcast %16 : vector<16x1xf32> to vector<16x128xf32>
    %18 = arith.mulf %13, %17 : vector<16x128xf32>
    %c0_5 = arith.constant 0 : index
    %c0_6 = arith.constant 0 : index
    %19 = vector.load %arg2[%c0_5, %c0_6] : memref<1x128xf32, #tpu.memory_space<vmem>>, vector<1x128xf32>
    %20 = vector.broadcast %19 : vector<1x128xf32> to vector<16x128xf32>
    %21 = arith.mulf %18, %20 : vector<16x128xf32>
    %c0_7 = arith.constant 0 : index
    %c0_8 = arith.constant 0 : index
    %22 = vector.load %arg3[%c0_7, %c0_8] : memref<1x128xf32, #tpu.memory_space<vmem>>, vector<1x128xf32>
    %23 = vector.broadcast %22 : vector<1x128xf32> to vector<16x128xf32>
    %24 = arith.addf %21, %23 : vector<16x128xf32>
    %25 = arith.truncf %24 : vector<16x128xf32> to vector<16x128xbf16>
    %c0_9 = arith.constant 0 : index
    %c0_10 = arith.constant 0 : index
    %26 = vector.load %arg4[%c0_9, %c0_10] : memref<128x384xbf16, #tpu.memory_space<vmem>>, vector<128x384xbf16>
    %cst_11 = arith.constant dense<0.000000e+00> : vector<16x384xf32>
    %27 = tpu.matmul %25, %26, %cst_11 {dimension_numbers = #tpu.dot_dimension_numbers<[1], [0], [0], [1], [0, 0, 1, 1], [], []>} : vector<16x128xbf16>, vector<128x384xbf16>, vector<16x384xf32> -> vector<16x384xf32>
    %c0_12 = arith.constant 0 : index
    %c0_13 = arith.constant 0 : index
    %28 = vector.load %arg5[%c0_12, %c0_13] : memref<16x16xf32, #tpu.memory_space<vmem>>, vector<16x16xf32>
    %c0_14 = arith.constant 0 : index
    %c0_15 = arith.constant 0 : index
    %29 = vector.load %arg6[%c0_14, %c0_15] : memref<16x16xf32, #tpu.memory_space<vmem>>, vector<16x16xf32>
    %30 = vector.extract_strided_slice %27 {offsets = [0, 0], sizes = [16, 128], strides = [1, 1]} : vector<16x384xf32> to vector<16x128xf32>
    %31 = vector.extract_strided_slice %30 {offsets = [0, 0], sizes = [16, 16], strides = [1, 1]} : vector<16x128xf32> to vector<16x16xf32>
    %32 = vector.extract_strided_slice %30 {offsets = [0, 16], sizes = [16, 16], strides = [1, 1]} : vector<16x128xf32> to vector<16x16xf32>
    %33 = arith.mulf %31, %28 : vector<16x16xf32>
    %34 = arith.mulf %32, %29 : vector<16x16xf32>
    %35 = arith.subf %33, %34 : vector<16x16xf32>
    %36 = arith.mulf %32, %28 : vector<16x16xf32>
    %37 = arith.mulf %31, %29 : vector<16x16xf32>
    %38 = arith.addf %36, %37 : vector<16x16xf32>
    %39 = vector.extract_strided_slice %30 {offsets = [0, 32], sizes = [16, 16], strides = [1, 1]} : vector<16x128xf32> to vector<16x16xf32>
    %40 = vector.extract_strided_slice %30 {offsets = [0, 48], sizes = [16, 16], strides = [1, 1]} : vector<16x128xf32> to vector<16x16xf32>
    %41 = arith.mulf %39, %28 : vector<16x16xf32>
    %42 = arith.mulf %40, %29 : vector<16x16xf32>
    %43 = arith.subf %41, %42 : vector<16x16xf32>
    %44 = arith.mulf %40, %28 : vector<16x16xf32>
    %45 = arith.mulf %39, %29 : vector<16x16xf32>
    %46 = arith.addf %44, %45 : vector<16x16xf32>
    %47 = vector.extract_strided_slice %30 {offsets = [0, 64], sizes = [16, 16], strides = [1, 1]} : vector<16x128xf32> to vector<16x16xf32>
    %48 = vector.extract_strided_slice %30 {offsets = [0, 80], sizes = [16, 16], strides = [1, 1]} : vector<16x128xf32> to vector<16x16xf32>
    %49 = arith.mulf %47, %28 : vector<16x16xf32>
    %50 = arith.mulf %48, %29 : vector<16x16xf32>
    %51 = arith.subf %49, %50 : vector<16x16xf32>
    %52 = arith.mulf %48, %28 : vector<16x16xf32>
    %53 = arith.mulf %47, %29 : vector<16x16xf32>
    %54 = arith.addf %52, %53 : vector<16x16xf32>
    %55 = vector.extract_strided_slice %30 {offsets = [0, 96], sizes = [16, 16], strides = [1, 1]} : vector<16x128xf32> to vector<16x16xf32>
    %56 = vector.extract_strided_slice %30 {offsets = [0, 112], sizes = [16, 16], strides = [1, 1]} : vector<16x128xf32> to vector<16x16xf32>
    %57 = arith.mulf %55, %28 : vector<16x16xf32>
    %58 = arith.mulf %56, %29 : vector<16x16xf32>
    %59 = arith.subf %57, %58 : vector<16x16xf32>
    %60 = arith.mulf %56, %28 : vector<16x16xf32>
    %61 = arith.mulf %55, %29 : vector<16x16xf32>
    %62 = arith.addf %60, %61 : vector<16x16xf32>
    %63 = tpu.concatenate %35, %38, %43, %46, %51, %54, %59, %62 in 1 : vector<16x16xf32>, vector<16x16xf32>, vector<16x16xf32>, vector<16x16xf32>, vector<16x16xf32>, vector<16x16xf32>, vector<16x16xf32>, vector<16x16xf32> -> vector<16x128xf32>
    %cst_16 = arith.constant 0.176776692 : f32
    %64 = vector.broadcast %cst_16 : f32 to vector<16x128xf32>
    %65 = arith.mulf %63, %64 : vector<16x128xf32>
    %66 = arith.truncf %65 : vector<16x128xf32> to vector<16x128xbf16>
    %c0_17 = arith.constant 0 : index
    %c0_18 = arith.constant 0 : index
    %67 = vector.load %arg7[%c0_17, %c0_18] : memref<16x128xbf16, #tpu.memory_space<vmem>>, vector<16x128xbf16>
    tpu.vector_store %arg7[%c0_17, %c0_18], %66 {strides = array<i32>} : memref<16x128xbf16, #tpu.memory_space<vmem>>, vector<16x128xbf16>,
    %68 = vector.extract_strided_slice %27 {offsets = [0, 128], sizes = [16, 128], strides = [1, 1]} : vector<16x384xf32> to vector<16x128xf32>
    %69 = vector.extract_strided_slice %68 {offsets = [0, 0], sizes = [16, 16], strides = [1, 1]} : vector<16x128xf32> to vector<16x16xf32>
    %70 = vector.extract_strided_slice %68 {offsets = [0, 16], sizes = [16, 16], strides = [1, 1]} : vector<16x128xf32> to vector<16x16xf32>
    %71 = arith.mulf %69, %28 : vector<16x16xf32>
    %72 = arith.mulf %70, %29 : vector<16x16xf32>
    %73 = arith.subf %71, %72 : vector<16x16xf32>
    %74 = arith.mulf %70, %28 : vector<16x16xf32>
    %75 = arith.mulf %69, %29 : vector<16x16xf32>
    %76 = arith.addf %74, %75 : vector<16x16xf32>
    %77 = vector.extract_strided_slice %68 {offsets = [0, 32], sizes = [16, 16], strides = [1, 1]} : vector<16x128xf32> to vector<16x16xf32>
    %78 = vector.extract_strided_slice %68 {offsets = [0, 48], sizes = [16, 16], strides = [1, 1]} : vector<16x128xf32> to vector<16x16xf32>
    %79 = arith.mulf %77, %28 : vector<16x16xf32>
    %80 = arith.mulf %78, %29 : vector<16x16xf32>
    %81 = arith.subf %79, %80 : vector<16x16xf32>
    %82 = arith.mulf %78, %28 : vector<16x16xf32>
    %83 = arith.mulf %77, %29 : vector<16x16xf32>
    %84 = arith.addf %82, %83 : vector<16x16xf32>
    %85 = vector.extract_strided_slice %68 {offsets = [0, 64], sizes = [16, 16], strides = [1, 1]} : vector<16x128xf32> to vector<16x16xf32>
    %86 = vector.extract_strided_slice %68 {offsets = [0, 80], sizes = [16, 16], strides = [1, 1]} : vector<16x128xf32> to vector<16x16xf32>
    %87 = arith.mulf %85, %28 : vector<16x16xf32>
    %88 = arith.mulf %86, %29 : vector<16x16xf32>
    %89 = arith.subf %87, %88 : vector<16x16xf32>
    %90 = arith.mulf %86, %28 : vector<16x16xf32>
    %91 = arith.mulf %85, %29 : vector<16x16xf32>
    %92 = arith.addf %90, %91 : vector<16x16xf32>
    %93 = vector.extract_strided_slice %68 {offsets = [0, 96], sizes = [16, 16], strides = [1, 1]} : vector<16x128xf32> to vector<16x16xf32>
    %94 = vector.extract_strided_slice %68 {offsets = [0, 112], sizes = [16, 16], strides = [1, 1]} : vector<16x128xf32> to vector<16x16xf32>
    %95 = arith.mulf %93, %28 : vector<16x16xf32>
    %96 = arith.mulf %94, %29 : vector<16x16xf32>
    %97 = arith.subf %95, %96 : vector<16x16xf32>
    %98 = arith.mulf %94, %28 : vector<16x16xf32>
    %99 = arith.mulf %93, %29 : vector<16x16xf32>
    %100 = arith.addf %98, %99 : vector<16x16xf32>
    %101 = tpu.concatenate %73, %76, %81, %84, %89, %92, %97, %100 in 1 : vector<16x16xf32>, vector<16x16xf32>, vector<16x16xf32>, vector<16x16xf32>, vector<16x16xf32>, vector<16x16xf32>, vector<16x16xf32>, vector<16x16xf32> -> vector<16x128xf32>
    %102 = arith.truncf %101 : vector<16x128xf32> to vector<16x128xbf16>
    %c0_19 = arith.constant 0 : index
    %c0_20 = arith.constant 0 : index
    %103 = vector.load %arg8[%c0_19, %c0_20] : memref<16x128xbf16, #tpu.memory_space<vmem>>, vector<16x128xbf16>
    tpu.vector_store %arg8[%c0_19, %c0_20], %102 {strides = array<i32>} : memref<16x128xbf16, #tpu.memory_space<vmem>>, vector<16x128xbf16>,
    %104 = vector.extract_strided_slice %27 {offsets = [0, 256], sizes = [16, 128], strides = [1, 1]} : vector<16x384xf32> to vector<16x128xf32>
    %105 = arith.truncf %104 : vector<16x128xf32> to vector<16x128xbf16>
    %c0_21 = arith.constant 0 : index
    %c0_22 = arith.constant 0 : index
    %106 = vector.load %arg9[%c0_21, %c0_22] : memref<16x128xbf16, #tpu.memory_space<vmem>>, vector<16x128xbf16>
    tpu.vector_store %arg9[%c0_21, %c0_22], %105 {strides = array<i32>} : memref<16x128xbf16, #tpu.memory_space<vmem>>, vector<16x128xbf16>,
    return
  }
  func.func @transform_0(%arg0: i32) -> (i32, i32) {
    %c0_i32 = arith.constant 0 : i32
    %c0_i32_0 = arith.constant 0 : i32
    return %arg0, %c0_i32 : i32, i32
  }
  func.func @transform_1(%arg0: i32) -> (i32, i32) {
    %c0_i32 = arith.constant 0 : i32
    %c0_i32_0 = arith.constant 0 : i32
    %c0_i32_1 = arith.constant 0 : i32
    return %c0_i32, %c0_i32_0 : i32, i32
  }
  func.func @transform_2(%arg0: i32) -> (i32, i32) {
    %c0_i32 = arith.constant 0 : i32
    %c0_i32_0 = arith.constant 0 : i32
    %c0_i32_1 = arith.constant 0 : i32
    return %c0_i32, %c0_i32_0 : i32, i32
  }
  func.func @transform_3(%arg0: i32) -> (i32, i32) {
    %c0_i32 = arith.constant 0 : i32
    %c0_i32_0 = arith.constant 0 : i32
    %c0_i32_1 = arith.constant 0 : i32
    return %c0_i32, %c0_i32_0 : i32, i32
  }
  func.func @transform_4(%arg0: i32) -> (i32, i32) {
    %c1_i32 = arith.constant 1 : i32
    %c0_i32 = arith.constant 0 : i32
    %0 = arith.cmpi eq, %c1_i32, %c0_i32 : i32
    %c1_i32_0 = arith.constant 1 : i32
    %1 = arith.select %0, %c1_i32_0, %c1_i32 : i32
    %2 = arith.remsi %arg0, %1 : i32
    %c0_i32_1 = arith.constant 0 : i32
    %3 = arith.cmpi ne, %2, %c0_i32_1 : i32
    %c0_i32_2 = arith.constant 0 : i32
    %4 = arith.cmpi slt, %2, %c0_i32_2 : i32
    %c0_i32_3 = arith.constant 0 : i32
    %5 = arith.cmpi slt, %1, %c0_i32_3 : i32
    %6 = arith.xori %4, %5 : i1
    %7 = arith.andi %6, %3 : i1
    %8 = arith.addi %2, %1 : i32
    %9 = arith.select %7, %8, %2 : i32
    %c0_i32_4 = arith.constant 0 : i32
    %c0_i32_5 = arith.constant 0 : i32
    return %9, %c0_i32_4 : i32, i32
  }
  func.func @transform_5(%arg0: i32) -> (i32, i32) {
    %c1_i32 = arith.constant 1 : i32
    %c0_i32 = arith.constant 0 : i32
    %0 = arith.cmpi eq, %c1_i32, %c0_i32 : i32
    %c1_i32_0 = arith.constant 1 : i32
    %1 = arith.select %0, %c1_i32_0, %c1_i32 : i32
    %2 = arith.remsi %arg0, %1 : i32
    %c0_i32_1 = arith.constant 0 : i32
    %3 = arith.cmpi ne, %2, %c0_i32_1 : i32
    %c0_i32_2 = arith.constant 0 : i32
    %4 = arith.cmpi slt, %2, %c0_i32_2 : i32
    %c0_i32_3 = arith.constant 0 : i32
    %5 = arith.cmpi slt, %1, %c0_i32_3 : i32
    %6 = arith.xori %4, %5 : i1
    %7 = arith.andi %6, %3 : i1
    %8 = arith.addi %2, %1 : i32
    %9 = arith.select %7, %8, %2 : i32
    %c0_i32_4 = arith.constant 0 : i32
    %c0_i32_5 = arith.constant 0 : i32
    return %9, %c0_i32_4 : i32, i32
  }
  func.func @transform_6(%arg0: i32) -> (i32, i32) {
    %c0_i32 = arith.constant 0 : i32
    %c0_i32_0 = arith.constant 0 : i32
    return %arg0, %c0_i32 : i32, i32
  }
  func.func @transform_7(%arg0: i32) -> (i32, i32) {
    %c0_i32 = arith.constant 0 : i32
    %c0_i32_0 = arith.constant 0 : i32
    return %arg0, %c0_i32 : i32, i32
  }
  func.func @transform_8(%arg0: i32) -> (i32, i32) {
    %c0_i32 = arith.constant 0 : i32
    %c0_i32_0 = arith.constant 0 : i32
    return %arg0, %c0_i32 : i32, i32
  }
}

</mosaic_0001>

<llo_original>
// kernel: tpu_custom_call.1
$region0: #{tpu_custom_call.1}
  #allocation0 [shape = 'u32[]', space=smem, size = 0x4, offset = 0x4, fixed_abs, tag = 'smem constant byte address 0x4 - core index']
  #allocation1 [shape = 'u32[144,128]{1,0:T(1,128)}', space=vmem, size = 0x12000, scoped, tag = 'internal scratch']
  %s0 = inlined_call_operand.hbm [shape: f32[32,128], index: 0, kind: input, shape index: {}]
  %s1 = inlined_call_operand.vmem [shape: f32[1,128], index: 1, kind: input, shape index: {}]
  %s2 = inlined_call_operand.vmem [shape: f32[1,128], index: 2, kind: input, shape index: {}]
  %s3 = inlined_call_operand.hbm [shape: bf16[128,384], index: 3, kind: input, shape index: {}]
  %s4 = inlined_call_operand.hbm [shape: f32[16,16], index: 4, kind: input, shape index: {}]
  %s5 = inlined_call_operand.hbm [shape: f32[16,16], index: 5, kind: input, shape index: {}]
  %s6 = inlined_call_operand.hbm [shape: bf16[32,128], index: 6, kind: output, shape index: {0}]
  %s7 = inlined_call_operand.hbm [shape: bf16[32,128], index: 7, kind: output, shape index: {1}]
  %s8 = inlined_call_operand.hbm [shape: bf16[32,128], index: 8, kind: output, shape index: {2}]
  %9 = xla_tuple %s6, %s7, %s8
  %s10 = sld [smem:[#allocation0]]
  $region89: #{tpu_custom_call.1} parent=0
    _
  %s12 = ssub.s32 1, %s10
  %s13 = scalar_select 0, %s12, %s10
  $region1: #{tpu_custom_call.1} parent=0
    #allocation2 [shape = 'u8[16384]{0}', space=vmem, size = 0x4000, scoped, tag = 'input window, operand 0']
    #allocation3 [shape = 's32[2]{0}', space=sflag, size = 0x8, scoped, tag = 'scoped memory for tpu_custom_call.1']
    #allocation4 [shape = 's32[2]{0}', space=sflag, size = 0x8, scoped, tag = 'scoped memory for tpu_custom_call.1']
    #allocation5 [shape = 'u8[98304]{0}', space=vmem, size = 0x18000, scoped, tag = 'input window, operand 3, single buffered']
    #allocation6 [shape = 's32[1]{0}', space=sflag, size = 0x4, scoped, tag = 'scoped memory for tpu_custom_call.1']
    #allocation7 [shape = 'u8[8192]{0}', space=vmem, size = 0x2000, scoped, tag = 'input window, operand 4, single buffered']
    #allocation8 [shape = 'u8[8192]{0}', space=vmem, size = 0x2000, scoped, tag = 'input window, operand 5, single buffered']
    #allocation9 [shape = 's32[1]{0}', space=sflag, size = 0x4, scoped, tag = 'scoped memory for tpu_custom_call.1']
    #allocation10 [shape = 'u8[8192]{0}', space=vmem, size = 0x2000, scoped, tag = 'output window, operand 0']
    #allocation11 [shape = 'u8[8192]{0}', space=vmem, size = 0x2000, scoped, tag = 'output window, operand 1']
    #allocation12 [shape = 's32[2]{0}', space=sflag, size = 0x8, scoped, tag = 'scoped memory for tpu_custom_call.1']
    #allocation13 [shape = 'u8[8192]{0}', space=vmem, size = 0x2000, scoped, tag = 'output window, operand 2']
    %14 = vsyncpa [#allocation3], 0
    %s15 = scalar_lea.sflag [#allocation3], 1
    %16 = vsyncpa %s15, 0
    %17 = vsyncpa [#allocation6], 0
    %18 = vsyncpa [#allocation9], 0
    %19 = vsyncpa [#allocation4], 0
    %s20 = scalar_lea.sflag [#allocation4], 1
    %21 = vsyncpa %s20, 0
    %22 = vsyncpa [#allocation12], 0
    %s23 = scalar_lea.sflag [#allocation12], 1
    %24 = vsyncpa %s23, 0
    loop: start=0, step=1, limit=4
    $region2: #{tpu_custom_call.1} parent=1 // loop_pre_header
      _
    $region3: #{tpu_custom_call.1} parent=1 // loop_header
      %s26 = sphi 0, %s30
      %p27 = scmp.ge.s32.totalorder %s26, 4
      %s36 = sphi 0, %s38
      %s39 = sphi 0, %s36
      %s40 = sphi 0, %s39
      %s56 = sphi 0, %s40
      %s60 = sphi 0, %s60
      %s62 = sphi 0, %s60
      %s63 = sphi 0, %s62
      %s77 = sphi 0, %s63
      %s81 = sphi 0, %s81
      %s83 = sphi 0, %s81
      %s84 = sphi 0, %s83
      %s98 = sphi 0, %s84
      %s102 = sphi 0, %s102
      %s104 = sphi 0, %s102
      %s105 = sphi 0, %s104
      %s119 = sphi 0, %s105
      %s123 = sphi 0, %s123
      %s125 = sphi 0, %s123
      %s126 = sphi 0, %s125
      %s140 = sphi 0, %s126
      %s144 = sphi 0, %s144
      %s146 = sphi 0, %s144
      %s147 = sphi 0, %s146
      %s161 = sphi 0, %s147
      %s167 = sphi 0, %s169
      %s170 = sphi 0, %s167
      %s171 = sphi 0, %s170
      %s187 = sphi 0, %s171
      %s193 = sphi 0, %s195
      %s196 = sphi 0, %s193
      %s197 = sphi 0, %s196
      %s213 = sphi 0, %s197
      %s219 = sphi 0, %s221
      %s222 = sphi 0, %s219
      %s223 = sphi 0, %s222
      %s239 = sphi 0, %s223
    $region4: #{tpu_custom_call.1} parent=1 // loop_header_branch
      %29 = sbr.rel (%p27) target = $region8
    $region5: #{tpu_custom_call.1} parent=1 // loop_body
      %s31 = ssub.s32 %s26, 1
      %s32 = ssub.s32 %s26, 2
      %s33 = sadd.s32 %s26, 1
      %s34 = ssub.s32 %s26, %s33
      %p35 = scmp.eq.s32.totalorder %s34, 0
      %s37 = sadd.s32 %s36, 1
      %s38 = scalar_select %p35, %s36, %s37
      %p41 = pneg %p35
      %p42 = scmp.eq.s32.totalorder %s26, 1
      %p43 = por %p41, %p42
      %p44 = scmp.ne.s32.totalorder %s36, %s39
      %p45 = scmp.eq.s32.totalorder %s26, 0
      %p46 = por %p44, %p45
      %p47 = scmp.ne.s32.totalorder %s36, %s39
      %p48 = scmp.eq.s32.totalorder %s31, 1
      %p49 = por %p47, %p48
      %p50 = scmp.ne.s32.totalorder %s39, %s40
      %p51 = scmp.eq.s32.totalorder %s31, 0
      %p52 = por %p50, %p51
      %p53 = scmp.ne.s32.totalorder %s39, %s40
      %p54 = scmp.eq.s32.totalorder %s32, 1
      %p55 = por %p53, %p54
      %p57 = scmp.ne.s32.totalorder %s40, %s56
      %p58 = scmp.eq.s32.totalorder %s32, 0
      %p59 = por %p57, %p58
      %s61 = sadd.s32 %s60, 1
      %p64 = scmp.eq.s32.totalorder %s26, 1
      %p65 = scmp.ne.s32.totalorder %s60, %s62
      %p66 = scmp.eq.s32.totalorder %s26, 0
      %p67 = por %p65, %p66
      %p68 = scmp.ne.s32.totalorder %s60, %s62
      %p69 = scmp.eq.s32.totalorder %s31, 1
      %p70 = por %p68, %p69
      %p71 = scmp.ne.s32.totalorder %s62, %s63
      %p72 = scmp.eq.s32.totalorder %s31, 0
      %p73 = por %p71, %p72
      %p74 = scmp.ne.s32.totalorder %s62, %s63
      %p75 = scmp.eq.s32.totalorder %s32, 1
      %p76 = por %p74, %p75
      %p78 = scmp.ne.s32.totalorder %s63, %s77
      %p79 = scmp.eq.s32.totalorder %s32, 0
      %p80 = por %p78, %p79
      %s82 = sadd.s32 %s81, 1
      %p85 = scmp.eq.s32.totalorder %s26, 1
      %p86 = scmp.ne.s32.totalorder %s81, %s83
      %p87 = scmp.eq.s32.totalorder %s26, 0
      %p88 = por %p86, %p87
      %p89 = scmp.ne.s32.totalorder %s81, %s83
      %p90 = scmp.eq.s32.totalorder %s31, 1
      %p91 = por %p89, %p90
      %p92 = scmp.ne.s32.totalorder %s83, %s84
      %p93 = scmp.eq.s32.totalorder %s31, 0
      %p94 = por %p92, %p93
      %p95 = scmp.ne.s32.totalorder %s83, %s84
      %p96 = scmp.eq.s32.totalorder %s32, 1
      %p97 = por %p95, %p96
      %p99 = scmp.ne.s32.totalorder %s84, %s98
      %p100 = scmp.eq.s32.totalorder %s32, 0
      %p101 = por %p99, %p100
      %s103 = sadd.s32 %s102, 1
      %p106 = scmp.eq.s32.totalorder %s26, 1
      %p107 = scmp.ne.s32.totalorder %s102, %s104
      %p108 = scmp.eq.s32.totalorder %s26, 0
      %p109 = por %p107, %p108
      %p110 = scmp.ne.s32.totalorder %s102, %s104
      %p111 = scmp.eq.s32.totalorder %s31, 1
      %p112 = por %p110, %p111
      %p113 = scmp.ne.s32.totalorder %s104, %s105
      %p114 = scmp.eq.s32.totalorder %s31, 0
      %p115 = por %p113, %p114
      %p116 = scmp.ne.s32.totalorder %s104, %s105
      %p117 = scmp.eq.s32.totalorder %s32, 1
      %p118 = por %p116, %p117
      %p120 = scmp.ne.s32.totalorder %s105, %s119
      %p121 = scmp.eq.s32.totalorder %s32, 0
      %p122 = por %p120, %p121
      %s124 = sadd.s32 %s123, 1
      %p127 = scmp.eq.s32.totalorder %s26, 1
      %p128 = scmp.ne.s32.totalorder %s123, %s125
      %p129 = scmp.eq.s32.totalorder %s26, 0
      %p130 = por %p128, %p129
      %p131 = scmp.ne.s32.totalorder %s123, %s125
      %p132 = scmp.eq.s32.totalorder %s31, 1
      %p133 = por %p131, %p132
      %p134 = scmp.ne.s32.totalorder %s125, %s126
      %p135 = scmp.eq.s32.totalorder %s31, 0
      %p136 = por %p134, %p135
      %p137 = scmp.ne.s32.totalorder %s125, %s126
      %p138 = scmp.eq.s32.totalorder %s32, 1
      %p139 = por %p137, %p138
      %p141 = scmp.ne.s32.totalorder %s126, %s140
      %p142 = scmp.eq.s32.totalorder %s32, 0
      %p143 = por %p141, %p142
      %s145 = sadd.s32 %s144, 1
      %p148 = scmp.eq.s32.totalorder %s26, 1
      %p149 = scmp.ne.s32.totalorder %s144, %s146
      %p150 = scmp.eq.s32.totalorder %s26, 0
      %p151 = por %p149, %p150
      %p152 = scmp.ne.s32.totalorder %s144, %s146
      %p153 = scmp.eq.s32.totalorder %s31, 1
      %p154 = por %p152, %p153
      %p155 = scmp.ne.s32.totalorder %s146, %s147
      %p156 = scmp.eq.s32.totalorder %s31, 0
      %p157 = por %p155, %p156
      %p158 = scmp.ne.s32.totalorder %s146, %s147
      %p159 = scmp.eq.s32.totalorder %s32, 1
      %p160 = por %p158, %p159
      %p162 = scmp.ne.s32.totalorder %s147, %s161
      %p163 = scmp.eq.s32.totalorder %s32, 0
      %p164 = por %p162, %p163
      %s165 = ssub.s32 %s26, %s33
      %p166 = scmp.eq.s32.totalorder %s165, 0
      %s168 = sadd.s32 %s167, 1
      %s169 = scalar_select %p166, %s167, %s168
      %p172 = pneg %p166
      %p173 = scmp.eq.s32.totalorder %s26, 1
      %p174 = por %p172, %p173
      %p175 = scmp.ne.s32.totalorder %s167, %s170
      %p176 = scmp.eq.s32.totalorder %s26, 0
      %p177 = por %p175, %p176
      %p178 = scmp.ne.s32.totalorder %s167, %s170
      %p179 = scmp.eq.s32.totalorder %s31, 1
      %p180 = por %p178, %p179
      %p181 = scmp.ne.s32.totalorder %s170, %s171
      %p182 = scmp.eq.s32.totalorder %s31, 0
      %p183 = por %p181, %p182
      %p184 = scmp.ne.s32.totalorder %s170, %s171
      %p185 = scmp.eq.s32.totalorder %s32, 1
      %p186 = por %p184, %p185
      %p188 = scmp.ne.s32.totalorder %s171, %s187
      %p189 = scmp.eq.s32.totalorder %s32, 0
      %p190 = por %p188, %p189
      %s191 = ssub.s32 %s26, %s33
      %p192 = scmp.eq.s32.totalorder %s191, 0
      %s194 = sadd.s32 %s193, 1
      %s195 = scalar_select %p192, %s193, %s194
      %p198 = pneg %p192
      %p199 = scmp.eq.s32.totalorder %s26, 1
      %p200 = por %p198, %p199
      %p201 = scmp.ne.s32.totalorder %s193, %s196
      %p202 = scmp.eq.s32.totalorder %s26, 0
      %p203 = por %p201, %p202
      %p204 = scmp.ne.s32.totalorder %s193, %s196
      %p205 = scmp.eq.s32.totalorder %s31, 1
      %p206 = por %p204, %p205
      %p207 = scmp.ne.s32.totalorder %s196, %s197
      %p208 = scmp.eq.s32.totalorder %s31, 0
      %p209 = por %p207, %p208
      %p210 = scmp.ne.s32.totalorder %s196, %s197
      %p211 = scmp.eq.s32.totalorder %s32, 1
      %p212 = por %p210, %p211
      %p214 = scmp.ne.s32.totalorder %s197, %s213
      %p215 = scmp.eq.s32.totalorder %s32, 0
      %p216 = por %p214, %p215
      %s217 = ssub.s32 %s26, %s33
      %p218 = scmp.eq.s32.totalorder %s217, 0
      %s220 = sadd.s32 %s219, 1
      %s221 = scalar_select %p218, %s219, %s220
      %p224 = pneg %p218
      %p225 = scmp.eq.s32.totalorder %s26, 1
      %p226 = por %p224, %p225
      %p227 = scmp.ne.s32.totalorder %s219, %s222
      %p228 = scmp.eq.s32.totalorder %s26, 0
      %p229 = por %p227, %p228
      %p230 = scmp.ne.s32.totalorder %s219, %s222
      %p231 = scmp.eq.s32.totalorder %s31, 1
      %p232 = por %p230, %p231
      %p233 = scmp.ne.s32.totalorder %s222, %s223
      %p234 = scmp.eq.s32.totalorder %s31, 0
      %p235 = por %p233, %p234
      %p236 = scmp.ne.s32.totalorder %s222, %s223
      %p237 = scmp.eq.s32.totalorder %s32, 1
      %p238 = por %p236, %p237
      %p240 = scmp.ne.s32.totalorder %s223, %s239
      %p241 = scmp.eq.s32.totalorder %s32, 0
      %p242 = por %p240, %p241
      %p243 = scmp.le.s32.totalorder 1, %s26
      %p244 = scmp.lt.s32.totalorder %s26, 3
      %p245 = pnand %p243, %p244
      %p246 = pneg %p245
      // Predicated region
      $region9: #{tpu_custom_call.1} parent=5 // pred_check
        _
      $region10: #{tpu_custom_call.1} parent=5 // pred_check_branch
        %248 = sbr.rel (%p245) target = $region12
      $region11: #{tpu_custom_call.1} parent=5 // pred_region
        %s249 = ssub.s32 %s26, 1
        // Predicated region
        $region13: #{tpu_custom_call.1} parent=11 // pred_check
          %p250 = pneg %p73
        $region14: #{tpu_custom_call.1} parent=11 // pred_check_branch
          %252 = sbr.rel (%p250) target = $region16
        $region15: #{tpu_custom_call.1} parent=11 // pred_region
          _
        $region16: #{tpu_custom_call.1} parent=11 // pred_fallthru
          _
        // Predicated region
        $region17: #{tpu_custom_call.1} parent=11 // pred_check
          %p253 = pneg %p94
        $region18: #{tpu_custom_call.1} parent=11 // pred_check_branch
          %255 = sbr.rel (%p253) target = $region20
        $region19: #{tpu_custom_call.1} parent=11 // pred_region
          _
        $region20: #{tpu_custom_call.1} parent=11 // pred_fallthru
          _
        // Predicated region
        $region21: #{tpu_custom_call.1} parent=11 // pred_check
          %p256 = pneg %p115
        $region22: #{tpu_custom_call.1} parent=11 // pred_check_branch
          %258 = sbr.rel (%p256) target = $region24
        $region23: #{tpu_custom_call.1} parent=11 // pred_region
          %s260 = ssub.s32 3072, 3072
          %261 = vsyncadd [#allocation6], %s260
          %s262 = sshll.u32 [#allocation5], 4
          %s263 = int_to_ptr.vmem [resolvable:$true] %s262
          %268 = dma.hbm_to_vmem [thread:$0]  %s3, 3072, %s263, [#allocation6], 192, 192, 12
        $region24: #{tpu_custom_call.1} parent=11 // pred_fallthru
          _
        // Predicated region
        $region25: #{tpu_custom_call.1} parent=11 // pred_check
          %p269 = pneg %p136
        $region26: #{tpu_custom_call.1} parent=11 // pred_check_branch
          %271 = sbr.rel (%p269) target = $region28
        $region27: #{tpu_custom_call.1} parent=11 // pred_region
          %s273 = ssub.s32 256, 256
          %274 = vsyncadd [#allocation6], %s273
          %s275 = sshll.u32 [#allocation7], 4
          %s276 = int_to_ptr.vmem [resolvable:$true] %s275
          %281 = dma.hbm_to_vmem [thread:$0]  %s4, 256, %s276, [#allocation6], 128, 128, 8
        $region28: #{tpu_custom_call.1} parent=11 // pred_fallthru
          _
        // Predicated region
        $region29: #{tpu_custom_call.1} parent=11 // pred_check
          %p282 = pneg %p157
        $region30: #{tpu_custom_call.1} parent=11 // pred_check_branch
          %284 = sbr.rel (%p282) target = $region32
        $region31: #{tpu_custom_call.1} parent=11 // pred_region
          %s286 = ssub.s32 256, 256
          %287 = vsyncadd [#allocation9], %s286
          %s288 = sshll.u32 [#allocation8], 4
          %s289 = int_to_ptr.vmem [resolvable:$true] %s288
          %294 = dma.hbm_to_vmem [thread:$0]  %s5, 256, %s289, [#allocation9], 128, 128, 8
        $region32: #{tpu_custom_call.1} parent=11 // pred_fallthru
          _
      $region12: #{tpu_custom_call.1} parent=5 // pred_fallthru
        _
      %p295 = scmp.lt.s32.totalorder %s26, 2
      // Predicated region
      $region33: #{tpu_custom_call.1} parent=5 // pred_check
        %p296 = pneg %p295
      $region34: #{tpu_custom_call.1} parent=5 // pred_check_branch
        %298 = sbr.rel (%p296) target = $region36
      $region35: #{tpu_custom_call.1} parent=5 // pred_region
        // Predicated region
        $region37: #{tpu_custom_call.1} parent=35 // pred_check
          %p299 = pneg %p46
        $region38: #{tpu_custom_call.1} parent=35 // pred_check_branch
          %301 = sbr.rel (%p299) target = $region40
        $region39: #{tpu_custom_call.1} parent=35 // pred_region
          %s302 = sand.u32 %s36, 1
          %s303 = scalar_lea.sflag [#allocation3], %s302
          %s304 = sand.u32 %s36, 1
          %s305 = smul.addr %s304, 16
          %s306 = scalar_lea.vmem [#allocation2], %s305
          %s307 = smul.u32 2, %s26
          %s309 = ssub.s32 256, 256
          %310 = vsyncadd %s303, %s309
          %s311 = smul.addr %s307, 128
          %s312 = scalar_lea.hbm %s0, %s311
          %s313 = sshll.u32 %s306, 4
          %s314 = int_to_ptr.vmem [resolvable:$true] %s313
          %319 = dma.hbm_to_vmem [thread:$0]  %s312, 256, %s314, %s303, 128, 128, 8
        $region40: #{tpu_custom_call.1} parent=35 // pred_fallthru
          _
      $region36: #{tpu_custom_call.1} parent=5 // pred_fallthru
        _
      %p320 = scmp.le.s32.totalorder 1, %s26
      %p321 = scmp.lt.s32.totalorder %s26, 3
      %p322 = pnand %p320, %p321
      %p323 = pneg %p322
      // Predicated region
      $region41: #{tpu_custom_call.1} parent=5 // pred_check
        _
      $region42: #{tpu_custom_call.1} parent=5 // pred_check_branch
        %325 = sbr.rel (%p322) target = $region44
      $region43: #{tpu_custom_call.1} parent=5 // pred_region
        %s326 = ssub.s32 %s26, 1
        %s327 = sand.u32 %s39, 1
        %s328 = scalar_lea.sflag [#allocation3], %s327
        %s329 = sand.u32 %s39, 1
        %s330 = smul.addr %s329, 16
        %s331 = scalar_lea.vmem [#allocation2], %s330
        // Predicated region
        $region45: #{tpu_custom_call.1} parent=43 // pred_check
          %p332 = pneg %p52
        $region46: #{tpu_custom_call.1} parent=43 // pred_check_branch
          %334 = sbr.rel (%p332) target = $region48
        $region47: #{tpu_custom_call.1} parent=43 // pred_region
          %335 = dma.done %s328, 256
        $region48: #{tpu_custom_call.1} parent=43 // pred_fallthru
          _
        // Predicated region
        $region49: #{tpu_custom_call.1} parent=43 // pred_check
          %p336 = pneg %p115
        $region50: #{tpu_custom_call.1} parent=43 // pred_check_branch
          %338 = sbr.rel (%p336) target = $region52
        $region51: #{tpu_custom_call.1} parent=43 // pred_region
          %339 = dma.done [#allocation6], 3072
        $region52: #{tpu_custom_call.1} parent=43 // pred_fallthru
          _
        // Predicated region
        $region53: #{tpu_custom_call.1} parent=43 // pred_check
          %p340 = pneg %p136
        $region54: #{tpu_custom_call.1} parent=43 // pred_check_branch
          %342 = sbr.rel (%p340) target = $region56
        $region55: #{tpu_custom_call.1} parent=43 // pred_region
          %343 = dma.done [#allocation6], 256
        $region56: #{tpu_custom_call.1} parent=43 // pred_fallthru
          _
        // Predicated region
        $region57: #{tpu_custom_call.1} parent=43 // pred_check
          %p344 = pneg %p157
        $region58: #{tpu_custom_call.1} parent=43 // pred_check_branch
          %346 = sbr.rel (%p344) target = $region60
        $region59: #{tpu_custom_call.1} parent=43 // pred_region
          %347 = dma.done [#allocation9], 256
        $region60: #{tpu_custom_call.1} parent=43 // pred_fallthru
          _
        %s348 = sand.u32 %s39, 1
        %s349 = scalar_lea.sflag [#allocation3], %s348
        %s350 = sand.u32 %s39, 1
        %s351 = smul.addr %s350, 16
        %s352 = scalar_lea.vmem [#allocation2], %s351
        %p353 = pneg %p52
        %p354 = pneg %p49
        %p355 = pneg %p73
        %p356 = pneg %p70
        %p357 = pneg %p94
        %p358 = pneg %p91
        %p359 = pneg %p115
        %p360 = pneg %p112
        %p361 = pneg %p136
        %p362 = pneg %p133
        %p363 = pneg %p157
        %p364 = pneg %p154
        %p365 = pneg %p183
        %p366 = pneg %p180
        %s367 = sand.u32 %s170, 1
        %s368 = scalar_lea.sflag [#allocation4], %s367
        %s369 = sand.u32 %s170, 1
        %s370 = smul.addr %s369, 8
        %s371 = scalar_lea.vmem [#allocation10], %s370
        %p372 = pneg %p209
        %p373 = pneg %p206
        %s374 = sand.u32 %s31, 1
        %s375 = scalar_lea.sflag [#allocation12], %s374
        %s376 = sand.u32 %s196, 1
        %s377 = smul.addr %s376, 8
        %s378 = scalar_lea.vmem [#allocation11], %s377
        %p379 = pneg %p235
        %p380 = pneg %p232
        %s381 = sand.u32 %s31, 1
        %s382 = scalar_lea.sflag [#allocation12], %s381
        %s383 = sand.u32 %s222, 1
        %s384 = smul.addr %s383, 8
        %s385 = scalar_lea.vmem [#allocation13], %s384
        %s386 = smul.u32 2, %s31
        %s387 = smul.u32 2, %s31
        %s388 = smul.u32 2, %s31
        %s389 = smul.u32 2, %s31
        %v391 = vld [vmem:[%s331] sm:$0xff]
        %v392 = vld [vmem:[%s331 + $0x8] sm:$0xff]
        %393 = vadd.xlane.f32.xlu0 %v391
        %v394 = vpop.xlane.xlu0 %393
        %395 = vadd.xlane.f32.xlu0 %v392
        %v396 = vpop.xlane.xlu0 %395
        %v397 = vrcp.pop 128.0
        %v398 = vmul.f32 %v394, %v397
        %v399 = vmul.f32 %v396, %v397
        %v400 = vsub.f32 %v391, %v398
        %v401 = vsub.f32 %v392, %v399
        %v402 = vmul.f32 %v400, %v400
        %v403 = vmul.f32 %v401, %v401
        %404 = vadd.xlane.f32.xlu0 %v402
        %v405 = vpop.xlane.xlu0 %404
        %406 = vadd.xlane.f32.xlu0 %v403
        %v407 = vpop.xlane.xlu0 %406
        %v408 = vmul.f32 %v405, %v397
        %v409 = vmul.f32 %v407, %v397
        %v410 = vadd.f32 %v408, 1e-05
        %v411 = vadd.f32 %v409, 1e-05
        %v412 = vrsqrt.pop %v410
        %v413 = vrsqrt.pop %v411
        %v414 = vmul.f32 %v400, %v412
        %v415 = vmul.f32 %v401, %v413
        %v416 = vld [vmem:[%s1] sm:$0x1]
        %v418 = vlaneseq
        %v419 = vshrl.u32 %v418, 7
        %v420 = vsub.s32 0, %v419
        %v421 = vrot.slane %v416, %v420
        %v423 = vmul.f32 %v414, %v421
        %v424 = vmul.f32 %v415, %v421
        %v425 = vld [vmem:[%s2] sm:$0x1]
        %v427 = vlaneseq
        %v428 = vshrl.u32 %v427, 7
        %v429 = vsub.s32 0, %v428
        %v430 = vrot.slane %v425, %v429
        %v432 = vadd.f32 %v423, %v430
        %v433 = vadd.f32 %v424, %v430
        %v434 = vpack.c.bf16 %v433, %v432
        %v435 = vld [vmem:[#allocation5] sm:$0xff]
        %v436 = vld [vmem:[#allocation5 + $0x8] sm:$0xf]
        %v437 = vld [vmem:[#allocation5 + $0xc] sm:$0xff]
        %v438 = vld [vmem:[#allocation5 + $0x14] sm:$0xf]
        %v439 = vld [vmem:[#allocation5 + $0x18] sm:$0xff]
        %v440 = vld [vmem:[#allocation5 + $0x20] sm:$0xf]
        %v441 = vld [vmem:[#allocation5 + $0x24] sm:$0xff]
        %v442 = vld [vmem:[#allocation5 + $0x2c] sm:$0xf]
        %v443 = vld [vmem:[#allocation5 + $0x30] sm:$0xff]
        %v444 = vld [vmem:[#allocation5 + $0x38] sm:$0xf]
        %v445 = vld [vmem:[#allocation5 + $0x3c] sm:$0xff]
        %v446 = vld [vmem:[#allocation5 + $0x44] sm:$0xf]
        %v447 = vld [vmem:[#allocation5 + $0x48] sm:$0xff]
        %v448 = vld [vmem:[#allocation5 + $0x50] sm:$0xf]
        %v449 = vld [vmem:[#allocation5 + $0x54] sm:$0xff]
        %v450 = vld [vmem:[#allocation5 + $0x5c] sm:$0xf]
        %v451 = vld [vmem:[#allocation5 + $0x60] sm:$0xff]
        %v452 = vld [vmem:[#allocation5 + $0x68] sm:$0xf]
        %v453 = vld [vmem:[#allocation5 + $0x6c] sm:$0xff]
        %v454 = vld [vmem:[#allocation5 + $0x74] sm:$0xf]
        %v455 = vld [vmem:[#allocation5 + $0x78] sm:$0xff]
        %v456 = vld [vmem:[#allocation5 + $0x80] sm:$0xf]
        %v457 = vld [vmem:[#allocation5 + $0x84] sm:$0xff]
        %v458 = vld [vmem:[#allocation5 + $0x8c] sm:$0xf]
        %v459 = vld [vmem:[#allocation5 + $0x90] sm:$0xff]
        %v460 = vld [vmem:[#allocation5 + $0x98] sm:$0xf]
        %v461 = vld [vmem:[#allocation5 + $0x9c] sm:$0xff]
        %v462 = vld [vmem:[#allocation5 + $0xa4] sm:$0xf]
        %v463 = vld [vmem:[#allocation5 + $0xa8] sm:$0xff]
        %v464 = vld [vmem:[#allocation5 + $0xb0] sm:$0xf]
        %v465 = vld [vmem:[#allocation5 + $0xb4] sm:$0xff]
        %v466 = vld [vmem:[#allocation5 + $0xbc] sm:$0xf]
        %v499 = vunpack.c.l.b16 %v435
        %v500 = vunpack.c.h.b16 %v435
        %v501 = vunpack.c.l.b16 %v436
        %v502 = vunpack.c.l.b16 %v437
        %v503 = vunpack.c.h.b16 %v437
        %v504 = vunpack.c.l.b16 %v438
        %v505 = vunpack.c.l.b16 %v439
        %v506 = vunpack.c.h.b16 %v439
        %v507 = vunpack.c.l.b16 %v440
        %v508 = vunpack.c.l.b16 %v441
        %v509 = vunpack.c.h.b16 %v441
        %v510 = vunpack.c.l.b16 %v442
        %v511 = vunpack.c.l.b16 %v443
        %v512 = vunpack.c.h.b16 %v443
        %v513 = vunpack.c.l.b16 %v444
        %v514 = vunpack.c.l.b16 %v445
        %v515 = vunpack.c.h.b16 %v445
        %v516 = vunpack.c.l.b16 %v446
        %v517 = vunpack.c.l.b16 %v447
        %v518 = vunpack.c.h.b16 %v447
        %v519 = vunpack.c.l.b16 %v448
        %v520 = vunpack.c.l.b16 %v449
        %v521 = vunpack.c.h.b16 %v449
        %v522 = vunpack.c.l.b16 %v450
        %v523 = vunpack.c.l.b16 %v451
        %v524 = vunpack.c.h.b16 %v451
        %v525 = vunpack.c.l.b16 %v452
        %v526 = vunpack.c.l.b16 %v453
        %v527 = vunpack.c.h.b16 %v453
        %v528 = vunpack.c.l.b16 %v454
        %v529 = vunpack.c.l.b16 %v455
        %v530 = vunpack.c.h.b16 %v455
        %v531 = vunpack.c.l.b16 %v456
        %v532 = vunpack.c.l.b16 %v457
        %v533 = vunpack.c.h.b16 %v457
        %v534 = vunpack.c.l.b16 %v458
        %v535 = vunpack.c.l.b16 %v459
        %v536 = vunpack.c.h.b16 %v459
        %v537 = vunpack.c.l.b16 %v460
        %v538 = vunpack.c.l.b16 %v461
        %v539 = vunpack.c.h.b16 %v461
        %v540 = vunpack.c.l.b16 %v462
        %v541 = vunpack.c.l.b16 %v463
        %v542 = vunpack.c.h.b16 %v463
        %v543 = vunpack.c.l.b16 %v464
        %v544 = vunpack.c.l.b16 %v465
        %v545 = vunpack.c.h.b16 %v465
        %v546 = vunpack.c.l.b16 %v466
        %v547 = vpack.c.b16 %v502, %v499
        %v548 = vpack.c.b16 %v503, %v500
        %v549 = vpack.c.b16 %v504, %v501
        %v550 = vpack.c.b16 %v508, %v505
        %v551 = vpack.c.b16 %v509, %v506
        %v552 = vpack.c.b16 %v510, %v507
        %v553 = vpack.c.b16 %v514, %v511
        %v554 = vpack.c.b16 %v515, %v512
        %v555 = vpack.c.b16 %v516, %v513
        %v556 = vpack.c.b16 %v520, %v517
        %v557 = vpack.c.b16 %v521, %v518
        %v558 = vpack.c.b16 %v522, %v519
        %v559 = vpack.c.b16 %v526, %v523
        %v560 = vpack.c.b16 %v527, %v524
        %v561 = vpack.c.b16 %v528, %v525
        %v562 = vpack.c.b16 %v532, %v529
        %v563 = vpack.c.b16 %v533, %v530
        %v564 = vpack.c.b16 %v534, %v531
        %v565 = vpack.c.b16 %v538, %v535
        %v566 = vpack.c.b16 %v539, %v536
        %v567 = vpack.c.b16 %v540, %v537
        %v568 = vpack.c.b16 %v544, %v541
        %v569 = vpack.c.b16 %v545, %v542
        %v570 = vpack.c.b16 %v546, %v543
        %595 = vmatprep.subr.bf16.mxu0 %v569
        %596 = vmatpush1.bf16.msra.mxu0 %v568
        %597 = vmatprep.subr.bf16.mxu0 %v566
        %598 = vmatpush1.bf16.msra.mxu0 %v565
        %599 = vmatprep.subr.bf16.mxu0 %v563
        %600 = vmatpush1.bf16.msra.mxu0 %v562
        %601 = vmatprep.subr.bf16.mxu0 %v560
        %602 = vmatpush1.bf16.msra.mxu0 %v559
        %603 = vmatprep.subr.bf16.mxu0 %v557
        %604 = vmatpush1.bf16.msra.mxu0 %v556
        %605 = vmatprep.subr.bf16.mxu0 %v554
        %606 = vmatpush1.bf16.msra.mxu0 %v553
        %607 = vmatprep.subr.bf16.mxu0 %v551
        %608 = vmatpush1.bf16.msra.mxu0 %v550
        %609 = vmatprep.subr.bf16.mxu0 %v548
        %610 = vmatpush1.bf16.msra.mxu0 %v547
        %611 = vmatprep.subr.bf16.mxu0 0
        %612 = vmatpush2.bf16.msra.mxu0 0
        %613 = vmatprep.subr.bf16.mxu0 0
        %614 = vmatpush2.bf16.msra.mxu0 0
        %615 = vmatprep.subr.bf16.mxu0 0
        %616 = vmatpush2.bf16.msra.mxu0 0
        %617 = vmatprep.subr.bf16.mxu0 0
        %618 = vmatpush2.bf16.msra.mxu0 0
        %619 = vmatprep.subr.bf16.mxu0 0
        %620 = vmatpush2.bf16.msra.mxu0 0
        %621 = vmatprep.subr.bf16.mxu0 0
        %622 = vmatpush2.bf16.msra.mxu0 0
        %623 = vmatprep.subr.bf16.mxu0 0
        %624 = vmatpush2.bf16.msra.mxu0 0
        %625 = vmatprep.subr.bf16.mxu0 0
        %626 = vmatpush2.bf16.msra.mxu0 0
        %627 = vmatprep.mubr.bf16.mxu0 0
        %628 = vmatmul.mubr.bf16.gmra.mxu0 %v434
        %v629 = vpop.f32.mrf.mxu0
        %v630 = vadd.f32 0.0, %v629
        %v631 = vpop.f32.mrf.mxu0
        %v632 = vadd.f32 0.0, %v631
        %v633 = vpop.f32.mrf.mxu0
        %v634 = vadd.f32 0.0, %v633
        %v635 = vpop.f32.mrf.mxu0
        %v636 = vadd.f32 0.0, %v635
        %637 = vdwg.mxu0
        %638 = vmatprep.subr.bf16.mxu0 0
        %639 = vmatpush1.bf16.msra.mxu0 %v570
        %640 = vmatprep.subr.bf16.mxu0 0
        %641 = vmatpush1.bf16.msra.mxu0 %v567
        %642 = vmatprep.subr.bf16.mxu0 0
        %643 = vmatpush1.bf16.msra.mxu0 %v564
        %644 = vmatprep.subr.bf16.mxu0 0
        %645 = vmatpush1.bf16.msra.mxu0 %v561
        %646 = vmatprep.subr.bf16.mxu0 0
        %647 = vmatpush1.bf16.msra.mxu0 %v558
        %648 = vmatprep.subr.bf16.mxu0 0
        %649 = vmatpush1.bf16.msra.mxu0 %v555
        %650 = vmatprep.subr.bf16.mxu0 0
        %651 = vmatpush1.bf16.msra.mxu0 %v552
        %652 = vmatprep.subr.bf16.mxu0 0
        %653 = vmatpush1.bf16.msra.mxu0 %v549
        %654 = vmatprep.subr.bf16.mxu0 0
        %655 = vmatpush2.bf16.msra.mxu0 0
        %656 = vmatprep.subr.bf16.mxu0 0
        %657 = vmatpush2.bf16.msra.mxu0 0
        %658 = vmatprep.subr.bf16.mxu0 0
        %659 = vmatpush2.bf16.msra.mxu0 0
        %660 = vmatprep.subr.bf16.mxu0 0
        %661 = vmatpush2.bf16.msra.mxu0 0
        %662 = vmatprep.subr.bf16.mxu0 0
        %663 = vmatpush2.bf16.msra.mxu0 0
        %664 = vmatprep.subr.bf16.mxu0 0
        %665 = vmatpush2.bf16.msra.mxu0 0
        %666 = vmatprep.subr.bf16.mxu0 0
        %667 = vmatpush2.bf16.msra.mxu0 0
        %668 = vmatprep.subr.bf16.mxu0 0
        %669 = vmatpush2.bf16.msra.mxu0 0
        %670 = vmatprep.mubr.bf16.mxu0 0
        %671 = vmatmul.mubr.bf16.gmra.mxu0 %v434
        %v672 = vpop.f32.mrf.mxu0
        %v673 = vadd.f32 0.0, %v672
        %v674 = vpop.f32.mrf.mxu0
        %v675 = vpop.f32.mrf.mxu0
        %v676 = vadd.f32 0.0, %v675
        %v677 = vpop.f32.mrf.mxu0
        %678 = vdwg.mxu0
        %v679 = vld [vmem:[#allocation7] sm:$0xff]
        %v680 = vld [vmem:[#allocation7 + $0x8] sm:$0xff]
        %v681 = vld [vmem:[#allocation8] sm:$0xff]
        %v682 = vld [vmem:[#allocation8 + $0x8] sm:$0xff]
        %v683 = vmul.f32 %v630, %v679
        %v684 = vmul.f32 %v634, %v680
        %687 = vrot.lane.b32.xlu0 %v681, 16
        %v688 = vpop.permute.xlu0 %687
        %689 = vrot.lane.b32.xlu0 %v682, 16
        %v690 = vpop.permute.xlu0 %689
        %v693 = vmul.f32 %v630, %v688
        %v694 = vmul.f32 %v634, %v690
        %697 = vrot.lane.b32.xlu0 %v693, 112
        %v698 = vpop.permute.xlu0 %697
        %699 = vrot.lane.b32.xlu0 %v694, 112
        %v700 = vpop.permute.xlu0 %699
        %v703 = vsub.f32 %v683, %v698
        %v704 = vsub.f32 %v684, %v700
        %707 = vrot.lane.b32.xlu0 %v679, 16
        %v708 = vpop.permute.xlu0 %707
        %709 = vrot.lane.b32.xlu0 %v680, 16
        %v710 = vpop.permute.xlu0 %709
        %v713 = vmul.f32 %v630, %v708
        %v714 = vmul.f32 %v634, %v710
        %v715 = vmul.f32 %v630, %v681
        %v716 = vmul.f32 %v634, %v682
        %719 = vrot.lane.b32.xlu0 %v715, 16
        %v720 = vpop.permute.xlu0 %719
        %721 = vrot.lane.b32.xlu0 %v716, 16
        %v722 = vpop.permute.xlu0 %721
        %v725 = vadd.f32 %v713, %v720
        %v726 = vadd.f32 %v714, %v722
        %727 = vrot.lane.b32.xlu0 %v679, 32
        %v728 = vpop.permute.xlu0 %727
        %729 = vrot.lane.b32.xlu0 %v680, 32
        %v730 = vpop.permute.xlu0 %729
        %v733 = vmul.f32 %v630, %v728
        %v734 = vmul.f32 %v634, %v730
        %735 = vrot.lane.b32.xlu0 %v681, 48
        %v736 = vpop.permute.xlu0 %735
        %737 = vrot.lane.b32.xlu0 %v682, 48
        %v738 = vpop.permute.xlu0 %737
        %v741 = vmul.f32 %v630, %v736
        %v742 = vmul.f32 %v634, %v738
        %745 = vrot.lane.b32.xlu0 %v741, 112
        %v746 = vpop.permute.xlu0 %745
        %747 = vrot.lane.b32.xlu0 %v742, 112
        %v748 = vpop.permute.xlu0 %747
        %v751 = vsub.f32 %v733, %v746
        %v752 = vsub.f32 %v734, %v748
        %753 = vrot.lane.b32.xlu0 %v679, 48
        %v754 = vpop.permute.xlu0 %753
        %755 = vrot.lane.b32.xlu0 %v680, 48
        %v756 = vpop.permute.xlu0 %755
        %v759 = vmul.f32 %v630, %v754
        %v760 = vmul.f32 %v634, %v756
        %761 = vrot.lane.b32.xlu0 %v681, 32
        %v762 = vpop.permute.xlu0 %761
        %763 = vrot.lane.b32.xlu0 %v682, 32
        %v764 = vpop.permute.xlu0 %763
        %v767 = vmul.f32 %v630, %v762
        %v768 = vmul.f32 %v634, %v764
        %771 = vrot.lane.b32.xlu0 %v767, 16
        %v772 = vpop.permute.xlu0 %771
        %773 = vrot.lane.b32.xlu0 %v768, 16
        %v774 = vpop.permute.xlu0 %773
        %v777 = vadd.f32 %v759, %v772
        %v778 = vadd.f32 %v760, %v774
        %779 = vrot.lane.b32.xlu0 %v679, 64
        %v780 = vpop.permute.xlu0 %779
        %781 = vrot.lane.b32.xlu0 %v680, 64
        %v782 = vpop.permute.xlu0 %781
        %v785 = vmul.f32 %v630, %v780
        %v786 = vmul.f32 %v634, %v782
        %787 = vrot.lane.b32.xlu0 %v681, 80
        %v788 = vpop.permute.xlu0 %787
        %789 = vrot.lane.b32.xlu0 %v682, 80
        %v790 = vpop.permute.xlu0 %789
        %v793 = vmul.f32 %v630, %v788
        %v794 = vmul.f32 %v634, %v790
        %797 = vrot.lane.b32.xlu0 %v793, 112
        %v798 = vpop.permute.xlu0 %797
        %799 = vrot.lane.b32.xlu0 %v794, 112
        %v800 = vpop.permute.xlu0 %799
        %v803 = vsub.f32 %v785, %v798
        %v804 = vsub.f32 %v786, %v800
        %805 = vrot.lane.b32.xlu0 %v679, 80
        %v806 = vpop.permute.xlu0 %805
        %807 = vrot.lane.b32.xlu0 %v680, 80
        %v808 = vpop.permute.xlu0 %807
        %v811 = vmul.f32 %v630, %v806
        %v812 = vmul.f32 %v634, %v808
        %813 = vrot.lane.b32.xlu0 %v681, 64
        %v814 = vpop.permute.xlu0 %813
        %815 = vrot.lane.b32.xlu0 %v682, 64
        %v816 = vpop.permute.xlu0 %815
        %v819 = vmul.f32 %v630, %v814
        %v820 = vmul.f32 %v634, %v816
        %823 = vrot.lane.b32.xlu0 %v819, 16
        %v824 = vpop.permute.xlu0 %823
        %825 = vrot.lane.b32.xlu0 %v820, 16
        %v826 = vpop.permute.xlu0 %825
        %v829 = vadd.f32 %v811, %v824
        %v830 = vadd.f32 %v812, %v826
        %831 = vrot.lane.b32.xlu0 %v679, 96
        %v832 = vpop.permute.xlu0 %831
        %833 = vrot.lane.b32.xlu0 %v680, 96
        %v834 = vpop.permute.xlu0 %833
        %v837 = vmul.f32 %v630, %v832
        %v838 = vmul.f32 %v634, %v834
        %839 = vrot.lane.b32.xlu0 %v681, 112
        %v840 = vpop.permute.xlu0 %839
        %841 = vrot.lane.b32.xlu0 %v682, 112
        %v842 = vpop.permute.xlu0 %841
        %v845 = vmul.f32 %v630, %v840
        %v846 = vmul.f32 %v634, %v842
        %849 = vrot.lane.b32.xlu0 %v845, 112
        %v850 = vpop.permute.xlu0 %849
        %851 = vrot.lane.b32.xlu0 %v846, 112
        %v852 = vpop.permute.xlu0 %851
        %v855 = vsub.f32 %v837, %v850
        %v856 = vsub.f32 %v838, %v852
        %857 = vrot.lane.b32.xlu0 %v679, 112
        %v858 = vpop.permute.xlu0 %857
        %859 = vrot.lane.b32.xlu0 %v680, 112
        %v860 = vpop.permute.xlu0 %859
        %v863 = vmul.f32 %v630, %v858
        %v864 = vmul.f32 %v634, %v860
        %865 = vrot.lane.b32.xlu0 %v681, 96
        %v866 = vpop.permute.xlu0 %865
        %867 = vrot.lane.b32.xlu0 %v682, 96
        %v868 = vpop.permute.xlu0 %867
        %v871 = vmul.f32 %v630, %v866
        %v872 = vmul.f32 %v634, %v868
        %875 = vrot.lane.b32.xlu0 %v871, 16
        %v876 = vpop.permute.xlu0 %875
        %877 = vrot.lane.b32.xlu0 %v872, 16
        %v878 = vpop.permute.xlu0 %877
        %v881 = vadd.f32 %v863, %v876
        %v882 = vadd.f32 %v864, %v878
        %vm883 = vcmask 130048
        %v884 = vsel %vm883, %v703, %v725
        %v885 = vsel %vm883, %v704, %v726
        %vm886 = vcmask 261120
        %v887 = vsel %vm886, %v884, %v751
        %v888 = vsel %vm886, %v885, %v752
        %vm889 = vcmask 392192
        %v890 = vsel %vm889, %v887, %v777
        %v891 = vsel %vm889, %v888, %v778
        %vm892 = vcmask 523264
        %v893 = vsel %vm892, %v890, %v803
        %v894 = vsel %vm892, %v891, %v804
        %vm895 = vcmask 654336
        %v896 = vsel %vm895, %v893, %v829
        %v897 = vsel %vm895, %v894, %v830
        %vm898 = vcmask 785408
        %v899 = vsel %vm898, %v896, %v855
        %v900 = vsel %vm898, %v897, %v856
        %vm901 = vcmask 916480
        %v902 = vsel %vm901, %v899, %v881
        %v903 = vsel %vm901, %v900, %v882
        %v904 = vmul.f32 %v902, 0.17677669
        %v905 = vmul.f32 %v903, 0.17677669
        %v906 = vpack.c.bf16 %v905, %v904
        %v908 = vunpack.c.l.b16 %v906
        %v909 = vunpack.c.h.b16 %v906
        %v910 = vpack.c.b16 %v908, %v908
        %v911 = vpack.c.b16 %v909, %v909
        %914 = vst [vmem:[%s371] sm:$0xf] %v910
        %915 = vst [vmem:[%s371 + $0x4] sm:$0xf] %v911
        %v916 = vmul.f32 %v632, %v679
        %v917 = vmul.f32 %v636, %v680
        %v918 = vmul.f32 %v632, %v688
        %v919 = vmul.f32 %v636, %v690
        %922 = vrot.lane.b32.xlu0 %v918, 112
        %v923 = vpop.permute.xlu0 %922
        %924 = vrot.lane.b32.xlu0 %v919, 112
        %v925 = vpop.permute.xlu0 %924
        %v928 = vsub.f32 %v916, %v923
        %v929 = vsub.f32 %v917, %v925
        %v930 = vmul.f32 %v632, %v708
        %v931 = vmul.f32 %v636, %v710
        %v932 = vmul.f32 %v632, %v681
        %v933 = vmul.f32 %v636, %v682
        %936 = vrot.lane.b32.xlu0 %v932, 16
        %v937 = vpop.permute.xlu0 %936
        %938 = vrot.lane.b32.xlu0 %v933, 16
        %v939 = vpop.permute.xlu0 %938
        %v942 = vadd.f32 %v930, %v937
        %v943 = vadd.f32 %v931, %v939
        %v944 = vmul.f32 %v632, %v728
        %v945 = vmul.f32 %v636, %v730
        %v946 = vmul.f32 %v632, %v736
        %v947 = vmul.f32 %v636, %v738
        %950 = vrot.lane.b32.xlu0 %v946, 112
        %v951 = vpop.permute.xlu0 %950
        %952 = vrot.lane.b32.xlu0 %v947, 112
        %v953 = vpop.permute.xlu0 %952
        %v956 = vsub.f32 %v944, %v951
        %v957 = vsub.f32 %v945, %v953
        %v958 = vmul.f32 %v632, %v754
        %v959 = vmul.f32 %v636, %v756
        %v960 = vmul.f32 %v632, %v762
        %v961 = vmul.f32 %v636, %v764
        %964 = vrot.lane.b32.xlu0 %v960, 16
        %v965 = vpop.permute.xlu0 %964
        %966 = vrot.lane.b32.xlu0 %v961, 16
        %v967 = vpop.permute.xlu0 %966
        %v970 = vadd.f32 %v958, %v965
        %v971 = vadd.f32 %v959, %v967
        %v972 = vmul.f32 %v632, %v780
        %v973 = vmul.f32 %v636, %v782
        %v974 = vmul.f32 %v632, %v788
        %v975 = vmul.f32 %v636, %v790
        %978 = vrot.lane.b32.xlu0 %v974, 112
        %v979 = vpop.permute.xlu0 %978
        %980 = vrot.lane.b32.xlu0 %v975, 112
        %v981 = vpop.permute.xlu0 %980
        %v984 = vsub.f32 %v972, %v979
        %v985 = vsub.f32 %v973, %v981
        %v986 = vmul.f32 %v632, %v806
        %v987 = vmul.f32 %v636, %v808
        %v988 = vmul.f32 %v632, %v814
        %v989 = vmul.f32 %v636, %v816
        %992 = vrot.lane.b32.xlu0 %v988, 16
        %v993 = vpop.permute.xlu0 %992
        %994 = vrot.lane.b32.xlu0 %v989, 16
        %v995 = vpop.permute.xlu0 %994
        %v998 = vadd.f32 %v986, %v993
        %v999 = vadd.f32 %v987, %v995
        %v1000 = vmul.f32 %v632, %v832
        %v1001 = vmul.f32 %v636, %v834
        %v1002 = vmul.f32 %v632, %v840
        %v1003 = vmul.f32 %v636, %v842
        %1006 = vrot.lane.b32.xlu0 %v1002, 112
        %v1007 = vpop.permute.xlu0 %1006
        %1008 = vrot.lane.b32.xlu0 %v1003, 112
        %v1009 = vpop.permute.xlu0 %1008
        %v1012 = vsub.f32 %v1000, %v1007
        %v1013 = vsub.f32 %v1001, %v1009
        %v1014 = vmul.f32 %v632, %v858
        %v1015 = vmul.f32 %v636, %v860
        %v1016 = vmul.f32 %v632, %v866
        %v1017 = vmul.f32 %v636, %v868
        %1020 = vrot.lane.b32.xlu0 %v1016, 16
        %v1021 = vpop.permute.xlu0 %1020
        %1022 = vrot.lane.b32.xlu0 %v1017, 16
        %v1023 = vpop.permute.xlu0 %1022
        %v1026 = vadd.f32 %v1014, %v1021
        %v1027 = vadd.f32 %v1015, %v1023
        %v1028 = vsel %vm883, %v928, %v942
        %v1029 = vsel %vm883, %v929, %v943
        %v1030 = vsel %vm886, %v1028, %v956
        %v1031 = vsel %vm886, %v1029, %v957
        %v1032 = vsel %vm889, %v1030, %v970
        %v1033 = vsel %vm889, %v1031, %v971
        %v1034 = vsel %vm892, %v1032, %v984
        %v1035 = vsel %vm892, %v1033, %v985
        %v1036 = vsel %vm895, %v1034, %v998
        %v1037 = vsel %vm895, %v1035, %v999
        %v1038 = vsel %vm898, %v1036, %v1012
        %v1039 = vsel %vm898, %v1037, %v1013
        %v1040 = vsel %vm901, %v1038, %v1026
        %v1041 = vsel %vm901, %v1039, %v1027
        %v1042 = vpack.c.bf16 %v1041, %v1040
        %v1044 = vunpack.c.l.b16 %v1042
        %v1045 = vunpack.c.h.b16 %v1042
        %v1046 = vpack.c.b16 %v1044, %v1044
        %v1047 = vpack.c.b16 %v1045, %v1045
        %1050 = vst [vmem:[%s378] sm:$0xf] %v1046
        %1051 = vst [vmem:[%s378 + $0x4] sm:$0xf] %v1047
        %v1052 = vpack.c.bf16 %v676, %v673
        %v1054 = vunpack.c.l.b16 %v1052
        %v1055 = vunpack.c.h.b16 %v1052
        %v1056 = vpack.c.b16 %v1054, %v1054
        %v1057 = vpack.c.b16 %v1055, %v1055
        %1060 = vst [vmem:[%s385] sm:$0xf] %v1056
        %1061 = vst [vmem:[%s385 + $0x4] sm:$0xf] %v1057
        %s1062 = sand.u32 %s170, 1
        %s1063 = scalar_lea.sflag [#allocation4], %s1062
        %s1064 = sand.u32 %s170, 1
        %s1065 = smul.addr %s1064, 8
        %s1066 = scalar_lea.vmem [#allocation10], %s1065
        %s1067 = sand.u32 %s31, 1
        %s1068 = scalar_lea.sflag [#allocation12], %s1067
        %s1069 = sand.u32 %s196, 1
        %s1070 = smul.addr %s1069, 8
        %s1071 = scalar_lea.vmem [#allocation11], %s1070
        %s1072 = sand.u32 %s31, 1
        %s1073 = scalar_lea.sflag [#allocation12], %s1072
        %s1074 = sand.u32 %s222, 1
        %s1075 = smul.addr %s1074, 8
        %s1076 = scalar_lea.vmem [#allocation13], %s1075
        // Predicated region
        $region61: #{tpu_custom_call.1} parent=43 // pred_check
          %p1077 = pneg %p180
        $region62: #{tpu_custom_call.1} parent=43 // pred_check_branch
          %1079 = sbr.rel (%p1077) target = $region64
        $region63: #{tpu_custom_call.1} parent=43 // pred_region
          %s1080 = smul.u32 2, %s31
          %s1082 = ssub.s32 128, 128
          %1083 = vsyncadd %s1063, %s1082
          %s1084 = smul.addr %s1080, 64
          %s1085 = scalar_lea.hbm %s6, %s1084
          %s1086 = sshll.u32 %s1066, 4
          %s1087 = int_to_ptr.vmem [resolvable:$true] %s1086
          %1092 = dma.vmem_to_hbm [thread:$0]  %s1087, 128, %s1085, %s1063, 64, 64, 4
        $region64: #{tpu_custom_call.1} parent=43 // pred_fallthru
          _
        // Predicated region
        $region65: #{tpu_custom_call.1} parent=43 // pred_check
          %p1093 = pneg %p206
        $region66: #{tpu_custom_call.1} parent=43 // pred_check_branch
          %1095 = sbr.rel (%p1093) target = $region68
        $region67: #{tpu_custom_call.1} parent=43 // pred_region
          %s1096 = smul.u32 2, %s31
          %s1098 = ssub.s32 128, 128
          %1099 = vsyncadd %s1068, %s1098
          %s1100 = smul.addr %s1096, 64
          %s1101 = scalar_lea.hbm %s7, %s1100
          %s1102 = sshll.u32 %s1071, 4
          %s1103 = int_to_ptr.vmem [resolvable:$true] %s1102
          %1108 = dma.vmem_to_hbm [thread:$0]  %s1103, 128, %s1101, %s1068, 64, 64, 4
        $region68: #{tpu_custom_call.1} parent=43 // pred_fallthru
          _
        // Predicated region
        $region69: #{tpu_custom_call.1} parent=43 // pred_check
          %p1109 = pneg %p232
        $region70: #{tpu_custom_call.1} parent=43 // pred_check_branch
          %1111 = sbr.rel (%p1109) target = $region72
        $region71: #{tpu_custom_call.1} parent=43 // pred_region
          %s1112 = smul.u32 2, %s31
          %s1114 = ssub.s32 128, 128
          %1115 = vsyncadd %s1073, %s1114
          %s1116 = smul.addr %s1112, 64
          %s1117 = scalar_lea.hbm %s8, %s1116
          %s1118 = sshll.u32 %s1076, 4
          %s1119 = int_to_ptr.vmem [resolvable:$true] %s1118
          %1124 = dma.vmem_to_hbm [thread:$0]  %s1119, 128, %s1117, %s1073, 64, 64, 4
        $region72: #{tpu_custom_call.1} parent=43 // pred_fallthru
          _
      $region44: #{tpu_custom_call.1} parent=5 // pred_fallthru
        _
      %p1125 = scmp.le.s32.totalorder 2, %s26
      // Predicated region
      $region73: #{tpu_custom_call.1} parent=5 // pred_check
        %p1126 = pneg %p1125
      $region74: #{tpu_custom_call.1} parent=5 // pred_check_branch
        %1128 = sbr.rel (%p1126) target = $region76
      $region75: #{tpu_custom_call.1} parent=5 // pred_region
        %s1129 = ssub.s32 %s26, 2
        // Predicated region
        $region77: #{tpu_custom_call.1} parent=75 // pred_check
          %p1130 = pneg %p186
        $region78: #{tpu_custom_call.1} parent=75 // pred_check_branch
          %1132 = sbr.rel (%p1130) target = $region80
        $region79: #{tpu_custom_call.1} parent=75 // pred_region
          %s1133 = sand.u32 %s171, 1
          %s1134 = scalar_lea.sflag [#allocation4], %s1133
          %s1135 = sand.u32 %s171, 1
          %s1136 = smul.addr %s1135, 8
          %s1137 = scalar_lea.vmem [#allocation10], %s1136
          %1138 = dma.done %s1134, 128
        $region80: #{tpu_custom_call.1} parent=75 // pred_fallthru
          _
        // Predicated region
        $region81: #{tpu_custom_call.1} parent=75 // pred_check
          %p1139 = pneg %p212
        $region82: #{tpu_custom_call.1} parent=75 // pred_check_branch
          %1141 = sbr.rel (%p1139) target = $region84
        $region83: #{tpu_custom_call.1} parent=75 // pred_region
          %s1142 = sand.u32 %s32, 1
          %s1143 = scalar_lea.sflag [#allocation12], %s1142
          %s1144 = sand.u32 %s197, 1
          %s1145 = smul.addr %s1144, 8
          %s1146 = scalar_lea.vmem [#allocation11], %s1145
          %1147 = dma.done %s1143, 128
        $region84: #{tpu_custom_call.1} parent=75 // pred_fallthru
          _
        // Predicated region
        $region85: #{tpu_custom_call.1} parent=75 // pred_check
          %p1148 = pneg %p238
        $region86: #{tpu_custom_call.1} parent=75 // pred_check_branch
          %1150 = sbr.rel (%p1148) target = $region88
        $region87: #{tpu_custom_call.1} parent=75 // pred_region
          %s1151 = sand.u32 %s32, 1
          %s1152 = scalar_lea.sflag [#allocation12], %s1151
          %s1153 = sand.u32 %s223, 1
          %s1154 = smul.addr %s1153, 8
          %s1155 = scalar_lea.vmem [#allocation13], %s1154
          %1156 = dma.done %s1152, 128
        $region88: #{tpu_custom_call.1} parent=75 // pred_fallthru
          _
      $region76: #{tpu_custom_call.1} parent=5 // pred_fallthru
        _
    $region6: #{tpu_custom_call.1} parent=1 // loop_footer
      %s30 = sadd.s32 1, %s26
    $region7: #{tpu_custom_call.1} parent=1 // loop_footer_branch
      %25 = sbr.rel target = $region3
    $region8: #{tpu_custom_call.1} parent=1 // loop_exit
      _
    %1157 = vsyncpa [#allocation3], 1
    %s1158 = scalar_lea.sflag [#allocation3], 1
    %1159 = vsyncpa %s1158, 1
    %1160 = vsyncpa [#allocation6], 1
    %1161 = vsyncpa [#allocation9], 1
    %1162 = vsyncpa [#allocation4], 1
    %s1163 = scalar_lea.sflag [#allocation4], 1
    %1164 = vsyncpa %s1163, 1
    %1165 = vsyncpa [#allocation12], 1
    %s1166 = scalar_lea.sflag [#allocation12], 1
    %1167 = vsyncpa %s1166, 1

</llo_original>
